<compile_context>
chip_gen: v5e
topology: v5e:2x2
jax: 0.10.0
libtpu: 0.0.40
codegen_flags: <defaults>
</compile_context>

<pallas_src>
import functools

import jax
import jax.numpy as jnp
import numpy as np
from jax.experimental import pallas as pl
from jax.experimental.pallas import tpu as pltpu


def _round_up(x, m):
    return ((x + m - 1) // m) * m


def _vmem_capacity_bytes():
    try:
        return int(pltpu.get_tpu_info().vmem_capacity_bytes)
    except Exception:
        return 64 * 1024 * 1024   # conservative: v7x per-TensorCore VMEM


def _mxu_dot(x, w):
    # Full f32 fidelity (multi-pass MXU) when operands are f32, to match the
    # PyTorch f32 linear; single-pass default for bf16 operands.
    prec = jax.lax.Precision.HIGHEST if x.dtype == jnp.float32 else None
    return jnp.dot(x, w, preferred_element_type=jnp.float32, precision=prec)


def _layernorm_store(x, g_ref, beta_ref, o_ref, eps):
    # LayerNorm over the hidden axis; statistics in f32, single-sweep variance.
    mean = jnp.mean(x, axis=-1, keepdims=True)
    mean_sq = jnp.mean(x * x, axis=-1, keepdims=True)
    var = jnp.maximum(mean_sq - mean * mean, 0.0)
    y = (x - mean) * jax.lax.rsqrt(var + eps)
    y = y * g_ref[...].astype(jnp.float32) + beta_ref[...].astype(jnp.float32)
    o_ref[...] = y.astype(o_ref.dtype)


def _fused_kernel(h_ref, res_ref, wt_ref, b_ref, g_ref, beta_ref, o_ref,
                  *, eps, matmul_dtype):
    # wt_ref is already transposed ([H_in, H_out]) and pre-cast in the wrapper.
    x_in = h_ref[...]
    if matmul_dtype is not None and x_in.dtype != matmul_dtype:
        x_in = x_in.astype(matmul_dtype)
    x = _mxu_dot(x_in, wt_ref[...])
    x = x + b_ref[...].astype(jnp.float32) + res_ref[...].astype(jnp.float32)
    _layernorm_store(x, g_ref, beta_ref, o_ref, eps)


def _fused_ksplit_kernel(h_ref, res_ref, wt_ref, b_ref, g_ref, beta_ref,
                         o_ref, acc_ref, *, eps, matmul_dtype):
    # Grid = (row tiles, K tiles); K is the inner ("arbitrary") reduction axis.
    k = pl.program_id(1)

    @pl.when(k == 0)
    def _():
        acc_ref[...] = jnp.zeros_like(acc_ref)

    x_in = h_ref[...]
    if matmul_dtype is not None and x_in.dtype != matmul_dtype:
        x_in = x_in.astype(matmul_dtype)
    acc_ref[...] += _mxu_dot(x_in, wt_ref[...])

    @pl.when(k == pl.num_programs(1) - 1)
    def _():
        x = (acc_ref[...] + b_ref[...].astype(jnp.float32)
             + res_ref[...].astype(jnp.float32))
        _layernorm_store(x, g_ref, beta_ref, o_ref, eps)


def sparse_bert_self_output(hidden_states, input_tensor, dense_w, dense_b,
                            ln_gamma, ln_beta, *, eps=1e-12, tm=None, tk=None,
                            matmul_dtype=None):
    """Fused dense (x @ W.T + b) + residual add + LayerNorm.

    hidden_states, input_tensor: [B, S, H]
    dense_w: [H_out, H_in] (PyTorch nn.Linear layout).
    dense_b, ln_gamma, ln_beta: [H]
    matmul_dtype: dtype of the MXU operands (accumulation, bias/residual add
        and LayerNorm statistics are always f32). Defaults to bf16 when the
        activations are bf16. On v5e the f32 path is MXU-compute-bound, so
        matmul_dtype=jnp.bfloat16 is the recommended setting there.
    tk: optional K-split size (must divide H, lane-aligned). Auto-enabled when
        the [H, H] weight cannot stay VMEM-resident.
    """
    B, S, H = hidden_states.shape
    M = B * S
    act_dtype = jnp.dtype(hidden_states.dtype)
    act_bytes = act_dtype.itemsize

    if matmul_dtype is None and act_dtype == jnp.dtype(jnp.bfloat16):
        matmul_dtype = jnp.bfloat16
    if matmul_dtype is not None:
        matmul_dtype = jnp.dtype(matmul_dtype)

    # One-time weight prep in the wrapper: transpose to a canonical [K, N] RHS
    # and cast to the MXU dtype, so the kernel body does neither per grid step.
    wt = dense_w.T
    if matmul_dtype is not None:
        wt = wt.astype(matmul_dtype)
    w_item = jnp.dtype(wt.dtype).itemsize

    h2 = hidden_states.reshape(M, H)
    r2 = input_tensor.reshape(M, H)
    b2 = dense_b.reshape(1, H)
    g2 = ln_gamma.reshape(1, H)
    bt2 = ln_beta.reshape(1, H)

    vmem_cap = _vmem_capacity_bytes()
    vmem_budget = int(0.80 * vmem_cap)

    row_align = 16 if act_bytes < 4 else 8
    M_ceil = _round_up(M, row_align)

    def _footprint(t, kk, w_bufs):
        acts = 2 * t * kk * act_bytes            # hidden block (double-buffered)
        acts += 2 * 2 * t * H * act_bytes        # residual + output (double-buffered)
        weight = w_bufs * kk * H * w_item        # weight slab(s)
        interm = 3 * t * H * 4                   # f32 matmul result / acc / LN temps
        return acts + weight + interm + 4 * H * 4

    # Decide whether the whole [H, H] weight can stay VMEM-resident; otherwise
    # K-split it with an accumulator scratch (shrinking tm cannot shrink the
    # weight footprint).
    need_ksplit = tk is not None
    if not need_ksplit and _footprint(row_align, H, 1) > vmem_budget:
        need_ksplit = True
    if need_ksplit:
        if tk is None:
            if H % 128 == 0:
                cands = [c * 128 for c in range(H // 128, 0, -1)
                         if H % (c * 128) == 0]
            else:
                cands = [H]
            tk = cands[-1]
            for c in cands:
                if _footprint(row_align, c, 2) <= vmem_budget:
                    tk = c
                    break
        assert H % tk == 0 and (tk % 128 == 0 or tk == H), (
            "tk must divide H and be lane-aligned")
        kk, w_bufs = tk, 2
    else:
        kk, w_bufs = H, 1

    # Row tile: as large as the VMEM budget allows (amortizes per-step
    # overhead), but keep >= ~4 row steps so megacore (v7x) can shard the
    # parallel axis; tails handled by Pallas masked partial blocks.
    if M < row_align:
        tm = M                                  # single full-extent block
    elif tm is None:
        tm = min(2048, M_ceil)
        tm = min(tm, max(row_align, _round_up(-(-M_ceil // 4), row_align)))
        while tm > row_align and _footprint(tm, kk, w_bufs) > vmem_budget:
            tm = _round_up(max(tm // 2, row_align), row_align)
    else:
        tm = min(M_ceil, max(row_align, _round_up(tm, row_align)))

    # Scoped VMEM limit: actual footprint (worst case: double-buffered weight)
    # + headroom, capped below physical capacity for this generation.
    vmem_limit = _footprint(tm, kk, 2) + (4 << 20)
    vmem_limit = int(max(16 << 20, min(vmem_limit, int(0.9 * vmem_cap))))

    cost = pl.CostEstimate(
        flops=2 * M * H * H + 10 * M * H,
        transcendentals=M,
        bytes_accessed=3 * M * H * act_bytes + H * H * w_item + 4 * H * 4)

    kern_kwargs = dict(eps=eps, matmul_dtype=matmul_dtype)

    def _invoke(param_mode):
        def pspec(shape, index_map):
            if param_mode is None:
                return pl.BlockSpec(shape, index_map)
            return pl.BlockSpec(shape, index_map, pipeline_mode=param_mode)

        if need_ksplit:
            grid = (pl.cdiv(M, tm), H // tk)
            in_specs = [
                pl.BlockSpec((tm, tk), lambda i, k: (i, k)),   # hidden block
                pl.BlockSpec((tm, H), lambda i, k: (i, 0)),    # residual
                pl.BlockSpec((tk, H), lambda i, k: (k, 0)),    # weight K-slab
                pspec((1, H), lambda i, k: (0, 0)),            # bias
                pspec((1, H), lambda i, k: (0, 0)),            # gamma
                pspec((1, H), lambda i, k: (0, 0)),            # beta
            ]
            out_specs = pl.BlockSpec((tm, H), lambda i, k: (i, 0))
            scratch = [pltpu.VMEM((tm, H), jnp.float32)]
            kern = functools.partial(_fused_ksplit_kernel, **kern_kwargs)
            dims = ("parallel", "arbitrary")
        else:
            grid = (pl.cdiv(M, tm),)
            in_specs = [
                pl.BlockSpec((tm, H), lambda i: (i, 0)),       # hidden tile
                pl.BlockSpec((tm, H), lambda i: (i, 0)),       # residual tile
                pspec((H, H), lambda i: (0, 0)),               # resident weight
                pspec((1, H), lambda i: (0, 0)),               # bias
                pspec((1, H), lambda i: (0, 0)),               # gamma
                pspec((1, H), lambda i: (0, 0)),               # beta
            ]
            out_specs = pl.BlockSpec((tm, H), lambda i: (i, 0))
            scratch = []
            kern = functools.partial(_fused_kernel, **kern_kwargs)
            dims = ("parallel",)

        return pl.pallas_call(
            kern,
            out_shape=jax.ShapeDtypeStruct((M, H), hidden_states.dtype),
            grid_spec=pltpu.PrefetchScalarGridSpec(
                num_scalar_prefetch=0,
                grid=grid,
                in_specs=in_specs,
                out_specs=out_specs,
                scratch_shapes=scratch),
            compiler_params=pltpu.CompilerParams(
                dimension_semantics=dims,
                vmem_limit_bytes=vmem_limit),
            cost_estimate=cost,
        )(h2, r2, wt, b2, g2, bt2)

    try:
        # Single-buffer the grid-invariant operands (weight/bias/gamma/beta in
        # the resident path; bias/gamma/beta in the K-split path).
        out = _invoke(pl.Buffered(1))
    except Exception:
        # Fallback for jax builds without pipeline_mode / Buffered(1).
        out = _invoke(None)

    return out.reshape(B, S, H)


def _reference(hidden_states, input_tensor, dense_w, dense_b, ln_gamma,
               ln_beta, eps=1e-12):
    x = jnp.einsum("bsh,oh->bso", hidden_states, dense_w,
                   precision=jax.lax.Precision.HIGHEST) + dense_b
    x = x + input_tensor
    mean = jnp.mean(x, axis=-1, keepdims=True)
    var = jnp.mean((x - mean) ** 2, axis=-1, keepdims=True)
    return (x - mean) * jax.lax.rsqrt(var + eps) * ln_gamma + ln_beta


if __name__ == "__main__":
    # Small BERT-like config: batch=2, seq=8, hidden=32, heads=4.
    B, S, H = 2, 8, 32
    eps = 1e-12

    key = jax.random.PRNGKey(0)
    k1, k2, k3, k4, k5, k6, k7, k8 = jax.random.split(key, 8)

    hidden_states = jax.random.normal(k1, (B, S, H), dtype=jnp.float32)
    input_tensor = jax.random.normal(k2, (B, S, H), dtype=jnp.float32)

    dense_w = jax.random.normal(k3, (H, H), dtype=jnp.float32) * 0.02
    dense_b = jax.random.normal(k4, (H,), dtype=jnp.float32) * 0.02
    ln_gamma = 1.0 + 0.1 * jax.random.normal(k5, (H,), dtype=jnp.float32)
    ln_beta = 0.1 * jax.random.normal(k6, (H,), dtype=jnp.float32)

    # 1) f32 path: exact semantics of the PyTorch module.
    out = sparse_bert_self_output(hidden_states, input_tensor, dense_w,
                                  dense_b, ln_gamma, ln_beta, eps=eps)
    out = jax.block_until_ready(out)
    ref = _reference(hidden_states, input_tensor, dense_w, dense_b, ln_gamma,
                     ln_beta, eps=eps)
    np.testing.assert_allclose(np.asarray(out), np.asarray(ref),
                               rtol=1e-5, atol=1e-5)

    # 2) bf16 activations: bf16 MXU operands (pre-cast weight), f32 accum + LN.
    hs_bf16 = hidden_states.astype(jnp.bfloat16)
    res_bf16 = input_tensor.astype(jnp.bfloat16)
    out_bf16 = sparse_bert_self_output(hs_bf16, res_bf16, dense_w, dense_b,
                                       ln_gamma, ln_beta, eps=eps)
    out_bf16 = jax.block_until_ready(out_bf16)
    ref_bf16 = _reference(hs_bf16.astype(jnp.float32),
                          res_bf16.astype(jnp.float32),
                          dense_w, dense_b, ln_gamma, ln_beta, eps=eps)
    np.testing.assert_allclose(np.asarray(out_bf16.astype(jnp.float32)),
                               np.asarray(ref_bf16), rtol=5e-2, atol=5e-2)

    # 3) Token count not divisible by the row tile: masked partial trailing
    #    block (no wrapper-side padding pass over HBM anymore).
    S3 = 13
    hs3 = jax.random.normal(k1, (B, S3, H), dtype=jnp.float32)
    res3 = jax.random.normal(k2, (B, S3, H), dtype=jnp.float32)
    out3 = sparse_bert_self_output(hs3, res3, dense_w, dense_b, ln_gamma,
                                   ln_beta, eps=eps)
    out3 = jax.block_until_ready(out3)
    ref3 = _reference(hs3, res3, dense_w, dense_b, ln_gamma, ln_beta, eps=eps)
    np.testing.assert_allclose(np.asarray(out3), np.asarray(ref3),
                               rtol=1e-5, atol=1e-5)

    # 4) Forced K-split path (reduction grid axis + accumulator scratch),
    #    exercised at a small lane-aligned hidden size.
    H4 = 256
    hs4 = jax.random.normal(k1, (B, S, H4), dtype=jnp.float32)
    res4 = jax.random.normal(k2, (B, S, H4), dtype=jnp.float32)
    w4 = jax.random.normal(k7, (H4, H4), dtype=jnp.float32) * 0.02
    b4 = jax.random.normal(k8, (H4,), dtype=jnp.float32) * 0.02
    g4 = 1.0 + 0.1 * jax.random.normal(k5, (H4,), dtype=jnp.float32)
    bt4 = 0.1 * jax.random.normal(k6, (H4,), dtype=jnp.float32)
    out4 = sparse_bert_self_output(hs4, res4, w4, b4, g4, bt4, eps=eps, tk=128)
    out4 = jax.block_until_ready(out4)
    ref4 = _reference(hs4, res4, w4, b4, g4, bt4, eps=eps)
    np.testing.assert_allclose(np.asarray(out4), np.asarray(ref4),
                               rtol=1e-4, atol=1e-4)

    print("KERNEL_OK")
</pallas_src>

<mosaic_0001>
module attributes {stable_mosaic.version = 11 : i64} {
  func.func @_fused_kernel(%arg0: i32, %arg1: memref<8x32xf32, #tpu.memory_space<vmem>>, %arg2: memref<8x32xf32, #tpu.memory_space<vmem>>, %arg3: memref<32x32xf32, #tpu.memory_space<vmem>>, %arg4: memref<1x32xf32, #tpu.memory_space<vmem>>, %arg5: memref<1x32xf32, #tpu.memory_space<vmem>>, %arg6: memref<1x32xf32, #tpu.memory_space<vmem>>, %arg7: memref<8x32xf32, #tpu.memory_space<vmem>>) attributes {dimension_semantics = [#tpu.dimension_semantics<parallel>], iteration_bounds = array<i64: 2>, scalar_prefetch = 0 : i64, scratch_operands = 0 : i64, tpu.core_type = #tpu.core_type<tc>, window_params = [{transform_indices = @transform_0, window_bounds = array<i64: 8, 32>}, {transform_indices = @transform_1, window_bounds = array<i64: 8, 32>}, {pipeline_mode = #tpu.pipeline_mode<synchronous>, transform_indices = @transform_2, window_bounds = array<i64: 32, 32>}, {pipeline_mode = #tpu.pipeline_mode<synchronous>, transform_indices = @transform_3, window_bounds = array<i64: 1, 32>}, {pipeline_mode = #tpu.pipeline_mode<synchronous>, transform_indices = @transform_4, window_bounds = array<i64: 1, 32>}, {pipeline_mode = #tpu.pipeline_mode<synchronous>, transform_indices = @transform_5, window_bounds = array<i64: 1, 32>}, {transform_indices = @transform_6, window_bounds = array<i64: 8, 32>}]} {
    %c0 = arith.constant 0 : index
    %c0_0 = arith.constant 0 : index
    %0 = vector.load %arg1[%c0, %c0_0] : memref<8x32xf32, #tpu.memory_space<vmem>>, vector<8x32xf32>
    %c0_1 = arith.constant 0 : index
    %c0_2 = arith.constant 0 : index
    %1 = vector.load %arg3[%c0_1, %c0_2] : memref<32x32xf32, #tpu.memory_space<vmem>>, vector<32x32xf32>
    %cst = arith.constant dense<0.000000e+00> : vector<8x32xf32>
    %2 = tpu.matmul %0, %1, %cst {dimension_numbers = #tpu.dot_dimension_numbers<[1], [0], [0], [1], [0, 0, 1, 1], [], []>, precision = #tpu.contract_precision<fp32>} : vector<8x32xf32>, vector<32x32xf32>, vector<8x32xf32> -> vector<8x32xf32>
    %c0_3 = arith.constant 0 : index
    %c0_4 = arith.constant 0 : index
    %3 = vector.load %arg4[%c0_3, %c0_4] : memref<1x32xf32, #tpu.memory_space<vmem>>, vector<1x32xf32>
    %4 = vector.broadcast %3 : vector<1x32xf32> to vector<8x32xf32>
    %5 = arith.addf %2, %4 : vector<8x32xf32>
    %c0_5 = arith.constant 0 : index
    %c0_6 = arith.constant 0 : index
    %6 = vector.load %arg2[%c0_5, %c0_6] : memref<8x32xf32, #tpu.memory_space<vmem>>, vector<8x32xf32>
    %7 = arith.addf %5, %6 : vector<8x32xf32>
    %cst_7 = arith.constant dense<0.000000e+00> : vector<8xf32>
    %8 = vector.multi_reduction <add>, %7, %cst_7 [1] : vector<8x32xf32> to vector<8xf32>
    %9 = vector.shape_cast %8 : vector<8xf32> to vector<8x1xf32>
    %cst_8 = arith.constant 3.200000e+01 : f32
    %10 = vector.broadcast %cst_8 : f32 to vector<8x1xf32>
    %11 = arith.divf %9, %10 : vector<8x1xf32>
    %12 = arith.mulf %7, %7 : vector<8x32xf32>
    %cst_9 = arith.constant dense<0.000000e+00> : vector<8xf32>
    %13 = vector.multi_reduction <add>, %12, %cst_9 [1] : vector<8x32xf32> to vector<8xf32>
    %14 = vector.shape_cast %13 : vector<8xf32> to vector<8x1xf32>
    %cst_10 = arith.constant 3.200000e+01 : f32
    %15 = vector.broadcast %cst_10 : f32 to vector<8x1xf32>
    %16 = arith.divf %14, %15 : vector<8x1xf32>
    %17 = arith.mulf %11, %11 : vector<8x1xf32>
    %18 = arith.subf %16, %17 : vector<8x1xf32>
    %cst_11 = arith.constant 0.000000e+00 : f32
    %19 = vector.broadcast %cst_11 : f32 to vector<8x1xf32>
    %20 = arith.maximumf %18, %19 : vector<8x1xf32>
    %21 = vector.broadcast %11 : vector<8x1xf32> to vector<8x32xf32>
    %22 = arith.subf %7, %21 : vector<8x32xf32>
    %cst_12 = arith.constant 9.99999996E-13 : f32
    %23 = vector.broadcast %cst_12 : f32 to vector<8x1xf32>
    %24 = arith.addf %20, %23 : vector<8x1xf32>
    %25 = math.rsqrt %24 : vector<8x1xf32>
    %26 = vector.broadcast %25 : vector<8x1xf32> to vector<8x32xf32>
    %27 = arith.mulf %22, %26 : vector<8x32xf32>
    %c0_13 = arith.constant 0 : index
    %c0_14 = arith.constant 0 : index
    %28 = vector.load %arg5[%c0_13, %c0_14] : memref<1x32xf32, #tpu.memory_space<vmem>>, vector<1x32xf32>
    %29 = vector.broadcast %28 : vector<1x32xf32> to vector<8x32xf32>
    %30 = arith.mulf %27, %29 : vector<8x32xf32>
    %c0_15 = arith.constant 0 : index
    %c0_16 = arith.constant 0 : index
    %31 = vector.load %arg6[%c0_15, %c0_16] : memref<1x32xf32, #tpu.memory_space<vmem>>, vector<1x32xf32>
    %32 = vector.broadcast %31 : vector<1x32xf32> to vector<8x32xf32>
    %33 = arith.addf %30, %32 : vector<8x32xf32>
    %c0_17 = arith.constant 0 : index
    %c0_18 = arith.constant 0 : index
    %34 = vector.load %arg7[%c0_17, %c0_18] : memref<8x32xf32, #tpu.memory_space<vmem>>, vector<8x32xf32>
    tpu.vector_store %arg7[%c0_17, %c0_18], %33 {strides = array<i32>} : memref<8x32xf32, #tpu.memory_space<vmem>>, vector<8x32xf32>,
    return
  }
  func.func @transform_0(%arg0: i32) -> (i32, i32) {
    %c0_i32 = arith.constant 0 : i32
    %c0_i32_0 = arith.constant 0 : i32
    return %arg0, %c0_i32 : i32, i32
  }
  func.func @transform_1(%arg0: i32) -> (i32, i32) {
    %c0_i32 = arith.constant 0 : i32
    %c0_i32_0 = arith.constant 0 : i32
    return %arg0, %c0_i32 : i32, i32
  }
  func.func @transform_2(%arg0: i32) -> (i32, i32) {
    %c0_i32 = arith.constant 0 : i32
    %c0_i32_0 = arith.constant 0 : i32
    %c0_i32_1 = arith.constant 0 : i32
    return %c0_i32, %c0_i32_0 : i32, i32
  }
  func.func @transform_3(%arg0: i32) -> (i32, i32) {
    %c0_i32 = arith.constant 0 : i32
    %c0_i32_0 = arith.constant 0 : i32
    %c0_i32_1 = arith.constant 0 : i32
    return %c0_i32, %c0_i32_0 : i32, i32
  }
  func.func @transform_4(%arg0: i32) -> (i32, i32) {
    %c0_i32 = arith.constant 0 : i32
    %c0_i32_0 = arith.constant 0 : i32
    %c0_i32_1 = arith.constant 0 : i32
    return %c0_i32, %c0_i32_0 : i32, i32
  }
  func.func @transform_5(%arg0: i32) -> (i32, i32) {
    %c0_i32 = arith.constant 0 : i32
    %c0_i32_0 = arith.constant 0 : i32
    %c0_i32_1 = arith.constant 0 : i32
    return %c0_i32, %c0_i32_0 : i32, i32
  }
  func.func @transform_6(%arg0: i32) -> (i32, i32) {
    %c0_i32 = arith.constant 0 : i32
    %c0_i32_0 = arith.constant 0 : i32
    return %arg0, %c0_i32 : i32, i32
  }
}

module attributes {stable_mosaic.version = 11 : i64} {
  func.func @_fused_kernel(%arg0: i32, %arg1: memref<8x32xf32, #tpu.memory_space<vmem>>, %arg2: memref<8x32xf32, #tpu.memory_space<vmem>>, %arg3: memref<32x32xf32, #tpu.memory_space<vmem>>, %arg4: memref<1x32xf32, #tpu.memory_space<vmem>>, %arg5: memref<1x32xf32, #tpu.memory_space<vmem>>, %arg6: memref<1x32xf32, #tpu.memory_space<vmem>>, %arg7: memref<8x32xf32, #tpu.memory_space<vmem>>) attributes {dimension_semantics = [#tpu.dimension_semantics<parallel>], iteration_bounds = array<i64: 2>, scalar_prefetch = 0 : i64, scratch_operands = 0 : i64, tpu.core_type = #tpu.core_type<tc>, window_params = [{transform_indices = @transform_0, window_bounds = array<i64: 8, 32>}, {transform_indices = @transform_1, window_bounds = array<i64: 8, 32>}, {pipeline_mode = #tpu.pipeline_mode<synchronous>, transform_indices = @transform_2, window_bounds = array<i64: 32, 32>}, {pipeline_mode = #tpu.pipeline_mode<synchronous>, transform_indices = @transform_3, window_bounds = array<i64: 1, 32>}, {pipeline_mode = #tpu.pipeline_mode<synchronous>, transform_indices = @transform_4, window_bounds = array<i64: 1, 32>}, {pipeline_mode = #tpu.pipeline_mode<synchronous>, transform_indices = @transform_5, window_bounds = array<i64: 1, 32>}, {transform_indices = @transform_6, window_bounds = array<i64: 8, 32>}]} {
    %c0 = arith.constant 0 : index
    %c0_0 = arith.constant 0 : index
    %0 = vector.load %arg1[%c0, %c0_0] : memref<8x32xf32, #tpu.memory_space<vmem>>, vector<8x32xf32>
    %c0_1 = arith.constant 0 : index
    %c0_2 = arith.constant 0 : index
    %1 = vector.load %arg3[%c0_1, %c0_2] : memref<32x32xf32, #tpu.memory_space<vmem>>, vector<32x32xf32>
    %cst = arith.constant dense<0.000000e+00> : vector<8x32xf32>
    %2 = tpu.matmul %0, %1, %cst {dimension_numbers = #tpu.dot_dimension_numbers<[1], [0], [0], [1], [0, 0, 1, 1], [], []>, precision = #tpu.contract_precision<fp32>} : vector<8x32xf32>, vector<32x32xf32>, vector<8x32xf32> -> vector<8x32xf32>
    %c0_3 = arith.constant 0 : index
    %c0_4 = arith.constant 0 : index
    %3 = vector.load %arg4[%c0_3, %c0_4] : memref<1x32xf32, #tpu.memory_space<vmem>>, vector<1x32xf32>
    %4 = vector.broadcast %3 : vector<1x32xf32> to vector<8x32xf32>
    %5 = arith.addf %2, %4 : vector<8x32xf32>
    %c0_5 = arith.constant 0 : index
    %c0_6 = arith.constant 0 : index
    %6 = vector.load %arg2[%c0_5, %c0_6] : memref<8x32xf32, #tpu.memory_space<vmem>>, vector<8x32xf32>
    %7 = arith.addf %5, %6 : vector<8x32xf32>
    %cst_7 = arith.constant dense<0.000000e+00> : vector<8xf32>
    %8 = vector.multi_reduction <add>, %7, %cst_7 [1] : vector<8x32xf32> to vector<8xf32>
    %9 = vector.shape_cast %8 : vector<8xf32> to vector<8x1xf32>
    %cst_8 = arith.constant 3.200000e+01 : f32
    %10 = vector.broadcast %cst_8 : f32 to vector<8x1xf32>
    %11 = arith.divf %9, %10 : vector<8x1xf32>
    %12 = arith.mulf %7, %7 : vector<8x32xf32>
    %cst_9 = arith.constant dense<0.000000e+00> : vector<8xf32>
    %13 = vector.multi_reduction <add>, %12, %cst_9 [1] : vector<8x32xf32> to vector<8xf32>
    %14 = vector.shape_cast %13 : vector<8xf32> to vector<8x1xf32>
    %cst_10 = arith.constant 3.200000e+01 : f32
    %15 = vector.broadcast %cst_10 : f32 to vector<8x1xf32>
    %16 = arith.divf %14, %15 : vector<8x1xf32>
    %17 = arith.mulf %11, %11 : vector<8x1xf32>
    %18 = arith.subf %16, %17 : vector<8x1xf32>
    %cst_11 = arith.constant 0.000000e+00 : f32
    %19 = vector.broadcast %cst_11 : f32 to vector<8x1xf32>
    %20 = arith.maximumf %18, %19 : vector<8x1xf32>
    %21 = vector.broadcast %11 : vector<8x1xf32> to vector<8x32xf32>
    %22 = arith.subf %7, %21 : vector<8x32xf32>
    %cst_12 = arith.constant 9.99999996E-13 : f32
    %23 = vector.broadcast %cst_12 : f32 to vector<8x1xf32>
    %24 = arith.addf %20, %23 : vector<8x1xf32>
    %25 = math.rsqrt %24 : vector<8x1xf32>
    %26 = vector.broadcast %25 : vector<8x1xf32> to vector<8x32xf32>
    %27 = arith.mulf %22, %26 : vector<8x32xf32>
    %c0_13 = arith.constant 0 : index
    %c0_14 = arith.constant 0 : index
    %28 = vector.load %arg5[%c0_13, %c0_14] : memref<1x32xf32, #tpu.memory_space<vmem>>, vector<1x32xf32>
    %29 = vector.broadcast %28 : vector<1x32xf32> to vector<8x32xf32>
    %30 = arith.mulf %27, %29 : vector<8x32xf32>
    %c0_15 = arith.constant 0 : index
    %c0_16 = arith.constant 0 : index
    %31 = vector.load %arg6[%c0_15, %c0_16] : memref<1x32xf32, #tpu.memory_space<vmem>>, vector<1x32xf32>
    %32 = vector.broadcast %31 : vector<1x32xf32> to vector<8x32xf32>
    %33 = arith.addf %30, %32 : vector<8x32xf32>
    %c0_17 = arith.constant 0 : index
    %c0_18 = arith.constant 0 : index
    %34 = vector.load %arg7[%c0_17, %c0_18] : memref<8x32xf32, #tpu.memory_space<vmem>>, vector<8x32xf32>
    tpu.vector_store %arg7[%c0_17, %c0_18], %33 {strides = array<i32>} : memref<8x32xf32, #tpu.memory_space<vmem>>, vector<8x32xf32>,
    return
  }
  func.func @transform_0(%arg0: i32) -> (i32, i32) {
    %c0_i32 = arith.constant 0 : i32
    %c0_i32_0 = arith.constant 0 : i32
    return %arg0, %c0_i32 : i32, i32
  }
  func.func @transform_1(%arg0: i32) -> (i32, i32) {
    %c0_i32 = arith.constant 0 : i32
    %c0_i32_0 = arith.constant 0 : i32
    return %arg0, %c0_i32 : i32, i32
  }
  func.func @transform_2(%arg0: i32) -> (i32, i32) {
    %c0_i32 = arith.constant 0 : i32
    %c0_i32_0 = arith.constant 0 : i32
    %c0_i32_1 = arith.constant 0 : i32
    return %c0_i32, %c0_i32_0 : i32, i32
  }
  func.func @transform_3(%arg0: i32) -> (i32, i32) {
    %c0_i32 = arith.constant 0 : i32
    %c0_i32_0 = arith.constant 0 : i32
    %c0_i32_1 = arith.constant 0 : i32
    return %c0_i32, %c0_i32_0 : i32, i32
  }
  func.func @transform_4(%arg0: i32) -> (i32, i32) {
    %c0_i32 = arith.constant 0 : i32
    %c0_i32_0 = arith.constant 0 : i32
    %c0_i32_1 = arith.constant 0 : i32
    return %c0_i32, %c0_i32_0 : i32, i32
  }
  func.func @transform_5(%arg0: i32) -> (i32, i32) {
    %c0_i32 = arith.constant 0 : i32
    %c0_i32_0 = arith.constant 0 : i32
    %c0_i32_1 = arith.constant 0 : i32
    return %c0_i32, %c0_i32_0 : i32, i32
  }
  func.func @transform_6(%arg0: i32) -> (i32, i32) {
    %c0_i32 = arith.constant 0 : i32
    %c0_i32_0 = arith.constant 0 : i32
    return %arg0, %c0_i32 : i32, i32
  }
}

</mosaic_0001>

<llo_original>
// kernel: tpu_custom_call.1
$region0: #{tpu_custom_call.1}
  #allocation0 [shape = 'u32[]', space=smem, size = 0x4, offset = 0x4, fixed_abs, tag = 'smem constant byte address 0x4 - core index']
  #allocation1 [shape = 'u32[72,128]{1,0:T(1,128)}', space=vmem, size = 0x9000, scoped, tag = 'internal scratch']
  %s0 = inlined_call_operand.hbm [shape: f32[16,32], index: 0, kind: input, shape index: {}]
  %s1 = inlined_call_operand.hbm [shape: f32[16,32], index: 1, kind: input, shape index: {}]
  %s2 = inlined_call_operand.hbm [shape: f32[32,32], index: 2, kind: input, shape index: {}]
  %s3 = inlined_call_operand.vmem [shape: f32[1,32], index: 3, kind: input, shape index: {}]
  %s4 = inlined_call_operand.vmem [shape: f32[1,32], index: 4, kind: input, shape index: {}]
  %s5 = inlined_call_operand.vmem [shape: f32[1,32], index: 5, kind: input, shape index: {}]
  %s6 = inlined_call_operand.hbm [shape: f32[16,32], index: 6, kind: output, shape index: {}]
  %s7 = sld [smem:[#allocation0]]
  $region69: #{tpu_custom_call.1} parent=0
    _
  %s9 = ssub.s32 1, %s7
  %s10 = scalar_select 0, %s9, %s7
  $region1: #{tpu_custom_call.1} parent=0
    #allocation2 [shape = 'u8[8192]{0}', space=vmem, size = 0x2000, scoped, tag = 'input window, operand 0']
    #allocation3 [shape = 's32[2]{0}', space=sflag, size = 0x8, scoped, tag = 'scoped memory for tpu_custom_call.1']
    #allocation4 [shape = 's32[2]{0}', space=sflag, size = 0x8, scoped, tag = 'scoped memory for tpu_custom_call.1']
    #allocation5 [shape = 'u8[8192]{0}', space=vmem, size = 0x2000, scoped, tag = 'input window, operand 1']
    #allocation6 [shape = 's32[2]{0}', space=sflag, size = 0x8, scoped, tag = 'scoped memory for tpu_custom_call.1']
    #allocation7 [shape = 'u8[16384]{0}', space=vmem, size = 0x4000, scoped, tag = 'input window, operand 2, single buffered']
    #allocation8 [shape = 'u8[8192]{0}', space=vmem, size = 0x2000, scoped, tag = 'output window, operand 0']
    %11 = vsyncpa [#allocation3], 0
    %s12 = scalar_lea.sflag [#allocation3], 1
    %13 = vsyncpa %s12, 0
    %14 = vsyncpa [#allocation6], 0
    %s15 = scalar_lea.sflag [#allocation6], 1
    %16 = vsyncpa %s15, 0
    %17 = vsyncpa [#allocation4], 0
    %s18 = scalar_lea.sflag [#allocation4], 1
    %19 = vsyncpa %s18, 0
    loop: start=0, step=1, limit=4
    $region2: #{tpu_custom_call.1} parent=1 // loop_pre_header
      _
    $region3: #{tpu_custom_call.1} parent=1 // loop_header
      %s21 = sphi 0, %s25
      %p22 = scmp.ge.s32.totalorder %s21, 4
      %s31 = sphi 0, %s33
      %s34 = sphi 0, %s31
      %s35 = sphi 0, %s34
      %s51 = sphi 0, %s35
      %s57 = sphi 0, %s59
      %s60 = sphi 0, %s57
      %s61 = sphi 0, %s60
      %s77 = sphi 0, %s61
      %s81 = sphi 0, %s81
      %s83 = sphi 0, %s81
      %s84 = sphi 0, %s83
      %s98 = sphi 0, %s84
      %s102 = sphi 0, %s102
      %s104 = sphi 0, %s102
      %s105 = sphi 0, %s104
      %s119 = sphi 0, %s105
      %s123 = sphi 0, %s123
      %s125 = sphi 0, %s123
      %s126 = sphi 0, %s125
      %s140 = sphi 0, %s126
      %s144 = sphi 0, %s144
      %s146 = sphi 0, %s144
      %s147 = sphi 0, %s146
      %s161 = sphi 0, %s147
      %s167 = sphi 0, %s169
      %s170 = sphi 0, %s167
      %s171 = sphi 0, %s170
      %s187 = sphi 0, %s171
    $region4: #{tpu_custom_call.1} parent=1 // loop_header_branch
      %24 = sbr.rel (%p22) target = $region8
    $region5: #{tpu_custom_call.1} parent=1 // loop_body
      %s26 = ssub.s32 %s21, 1
      %s27 = ssub.s32 %s21, 2
      %s28 = sadd.s32 %s21, 1
      %s29 = ssub.s32 %s21, %s28
      %p30 = scmp.eq.s32.totalorder %s29, 0
      %s32 = sadd.s32 %s31, 1
      %s33 = scalar_select %p30, %s31, %s32
      %p36 = pneg %p30
      %p37 = scmp.eq.s32.totalorder %s21, 1
      %p38 = por %p36, %p37
      %p39 = scmp.ne.s32.totalorder %s31, %s34
      %p40 = scmp.eq.s32.totalorder %s21, 0
      %p41 = por %p39, %p40
      %p42 = scmp.ne.s32.totalorder %s31, %s34
      %p43 = scmp.eq.s32.totalorder %s26, 1
      %p44 = por %p42, %p43
      %p45 = scmp.ne.s32.totalorder %s34, %s35
      %p46 = scmp.eq.s32.totalorder %s26, 0
      %p47 = por %p45, %p46
      %p48 = scmp.ne.s32.totalorder %s34, %s35
      %p49 = scmp.eq.s32.totalorder %s27, 1
      %p50 = por %p48, %p49
      %p52 = scmp.ne.s32.totalorder %s35, %s51
      %p53 = scmp.eq.s32.totalorder %s27, 0
      %p54 = por %p52, %p53
      %s55 = ssub.s32 %s21, %s28
      %p56 = scmp.eq.s32.totalorder %s55, 0
      %s58 = sadd.s32 %s57, 1
      %s59 = scalar_select %p56, %s57, %s58
      %p62 = pneg %p56
      %p63 = scmp.eq.s32.totalorder %s21, 1
      %p64 = por %p62, %p63
      %p65 = scmp.ne.s32.totalorder %s57, %s60
      %p66 = scmp.eq.s32.totalorder %s21, 0
      %p67 = por %p65, %p66
      %p68 = scmp.ne.s32.totalorder %s57, %s60
      %p69 = scmp.eq.s32.totalorder %s26, 1
      %p70 = por %p68, %p69
      %p71 = scmp.ne.s32.totalorder %s60, %s61
      %p72 = scmp.eq.s32.totalorder %s26, 0
      %p73 = por %p71, %p72
      %p74 = scmp.ne.s32.totalorder %s60, %s61
      %p75 = scmp.eq.s32.totalorder %s27, 1
      %p76 = por %p74, %p75
      %p78 = scmp.ne.s32.totalorder %s61, %s77
      %p79 = scmp.eq.s32.totalorder %s27, 0
      %p80 = por %p78, %p79
      %s82 = sadd.s32 %s81, 1
      %p85 = scmp.eq.s32.totalorder %s21, 1
      %p86 = scmp.ne.s32.totalorder %s81, %s83
      %p87 = scmp.eq.s32.totalorder %s21, 0
      %p88 = por %p86, %p87
      %p89 = scmp.ne.s32.totalorder %s81, %s83
      %p90 = scmp.eq.s32.totalorder %s26, 1
      %p91 = por %p89, %p90
      %p92 = scmp.ne.s32.totalorder %s83, %s84
      %p93 = scmp.eq.s32.totalorder %s26, 0
      %p94 = por %p92, %p93
      %p95 = scmp.ne.s32.totalorder %s83, %s84
      %p96 = scmp.eq.s32.totalorder %s27, 1
      %p97 = por %p95, %p96
      %p99 = scmp.ne.s32.totalorder %s84, %s98
      %p100 = scmp.eq.s32.totalorder %s27, 0
      %p101 = por %p99, %p100
      %s103 = sadd.s32 %s102, 1
      %p106 = scmp.eq.s32.totalorder %s21, 1
      %p107 = scmp.ne.s32.totalorder %s102, %s104
      %p108 = scmp.eq.s32.totalorder %s21, 0
      %p109 = por %p107, %p108
      %p110 = scmp.ne.s32.totalorder %s102, %s104
      %p111 = scmp.eq.s32.totalorder %s26, 1
      %p112 = por %p110, %p111
      %p113 = scmp.ne.s32.totalorder %s104, %s105
      %p114 = scmp.eq.s32.totalorder %s26, 0
      %p115 = por %p113, %p114
      %p116 = scmp.ne.s32.totalorder %s104, %s105
      %p117 = scmp.eq.s32.totalorder %s27, 1
      %p118 = por %p116, %p117
      %p120 = scmp.ne.s32.totalorder %s105, %s119
      %p121 = scmp.eq.s32.totalorder %s27, 0
      %p122 = por %p120, %p121
      %s124 = sadd.s32 %s123, 1
      %p127 = scmp.eq.s32.totalorder %s21, 1
      %p128 = scmp.ne.s32.totalorder %s123, %s125
      %p129 = scmp.eq.s32.totalorder %s21, 0
      %p130 = por %p128, %p129
      %p131 = scmp.ne.s32.totalorder %s123, %s125
      %p132 = scmp.eq.s32.totalorder %s26, 1
      %p133 = por %p131, %p132
      %p134 = scmp.ne.s32.totalorder %s125, %s126
      %p135 = scmp.eq.s32.totalorder %s26, 0
      %p136 = por %p134, %p135
      %p137 = scmp.ne.s32.totalorder %s125, %s126
      %p138 = scmp.eq.s32.totalorder %s27, 1
      %p139 = por %p137, %p138
      %p141 = scmp.ne.s32.totalorder %s126, %s140
      %p142 = scmp.eq.s32.totalorder %s27, 0
      %p143 = por %p141, %p142
      %s145 = sadd.s32 %s144, 1
      %p148 = scmp.eq.s32.totalorder %s21, 1
      %p149 = scmp.ne.s32.totalorder %s144, %s146
      %p150 = scmp.eq.s32.totalorder %s21, 0
      %p151 = por %p149, %p150
      %p152 = scmp.ne.s32.totalorder %s144, %s146
      %p153 = scmp.eq.s32.totalorder %s26, 1
      %p154 = por %p152, %p153
      %p155 = scmp.ne.s32.totalorder %s146, %s147
      %p156 = scmp.eq.s32.totalorder %s26, 0
      %p157 = por %p155, %p156
      %p158 = scmp.ne.s32.totalorder %s146, %s147
      %p159 = scmp.eq.s32.totalorder %s27, 1
      %p160 = por %p158, %p159
      %p162 = scmp.ne.s32.totalorder %s147, %s161
      %p163 = scmp.eq.s32.totalorder %s27, 0
      %p164 = por %p162, %p163
      %s165 = ssub.s32 %s21, %s28
      %p166 = scmp.eq.s32.totalorder %s165, 0
      %s168 = sadd.s32 %s167, 1
      %s169 = scalar_select %p166, %s167, %s168
      %p172 = pneg %p166
      %p173 = scmp.eq.s32.totalorder %s21, 1
      %p174 = por %p172, %p173
      %p175 = scmp.ne.s32.totalorder %s167, %s170
      %p176 = scmp.eq.s32.totalorder %s21, 0
      %p177 = por %p175, %p176
      %p178 = scmp.ne.s32.totalorder %s167, %s170
      %p179 = scmp.eq.s32.totalorder %s26, 1
      %p180 = por %p178, %p179
      %p181 = scmp.ne.s32.totalorder %s170, %s171
      %p182 = scmp.eq.s32.totalorder %s26, 0
      %p183 = por %p181, %p182
      %p184 = scmp.ne.s32.totalorder %s170, %s171
      %p185 = scmp.eq.s32.totalorder %s27, 1
      %p186 = por %p184, %p185
      %p188 = scmp.ne.s32.totalorder %s171, %s187
      %p189 = scmp.eq.s32.totalorder %s27, 0
      %p190 = por %p188, %p189
      %p191 = scmp.le.s32.totalorder 1, %s21
      %p192 = scmp.lt.s32.totalorder %s21, 3
      %p193 = pnand %p191, %p192
      %p194 = pneg %p193
      // Predicated region
      $region9: #{tpu_custom_call.1} parent=5 // pred_check
        _
      $region10: #{tpu_custom_call.1} parent=5 // pred_check_branch
        %196 = sbr.rel (%p193) target = $region12
      $region11: #{tpu_custom_call.1} parent=5 // pred_region
        %s197 = ssub.s32 %s21, 1
        // Predicated region
        $region13: #{tpu_custom_call.1} parent=11 // pred_check
          %p198 = pneg %p94
        $region14: #{tpu_custom_call.1} parent=11 // pred_check_branch
          %200 = sbr.rel (%p198) target = $region16
        $region15: #{tpu_custom_call.1} parent=11 // pred_region
          %202 = vsyncadd [#allocation6], 0
          %s203 = sshll.u32 %s2, 4
          %s204 = int_to_ptr.hbm [resolvable:$true] %s203
          %s205 = sshll.u32 [#allocation7], 4
          %s206 = int_to_ptr.vmem [resolvable:$true] %s205
          %211 = dma.hbm_to_vmem [thread:$0]  %s204, 512, %s206, [#allocation6], 128, 128, 8
        $region16: #{tpu_custom_call.1} parent=11 // pred_fallthru
          _
        // Predicated region
        $region17: #{tpu_custom_call.1} parent=11 // pred_check
          %p212 = pneg %p115
        $region18: #{tpu_custom_call.1} parent=11 // pred_check_branch
          %214 = sbr.rel (%p212) target = $region20
        $region19: #{tpu_custom_call.1} parent=11 // pred_region
          _
        $region20: #{tpu_custom_call.1} parent=11 // pred_fallthru
          _
        // Predicated region
        $region21: #{tpu_custom_call.1} parent=11 // pred_check
          %p215 = pneg %p136
        $region22: #{tpu_custom_call.1} parent=11 // pred_check_branch
          %217 = sbr.rel (%p215) target = $region24
        $region23: #{tpu_custom_call.1} parent=11 // pred_region
          _
        $region24: #{tpu_custom_call.1} parent=11 // pred_fallthru
          _
        // Predicated region
        $region25: #{tpu_custom_call.1} parent=11 // pred_check
          %p218 = pneg %p157
        $region26: #{tpu_custom_call.1} parent=11 // pred_check_branch
          %220 = sbr.rel (%p218) target = $region28
        $region27: #{tpu_custom_call.1} parent=11 // pred_region
          _
        $region28: #{tpu_custom_call.1} parent=11 // pred_fallthru
          _
      $region12: #{tpu_custom_call.1} parent=5 // pred_fallthru
        _
      %p221 = scmp.lt.s32.totalorder %s21, 2
      // Predicated region
      $region29: #{tpu_custom_call.1} parent=5 // pred_check
        %p222 = pneg %p221
      $region30: #{tpu_custom_call.1} parent=5 // pred_check_branch
        %224 = sbr.rel (%p222) target = $region32
      $region31: #{tpu_custom_call.1} parent=5 // pred_region
        // Predicated region
        $region33: #{tpu_custom_call.1} parent=31 // pred_check
          %p225 = pneg %p41
        $region34: #{tpu_custom_call.1} parent=31 // pred_check_branch
          %227 = sbr.rel (%p225) target = $region36
        $region35: #{tpu_custom_call.1} parent=31 // pred_region
          %s228 = sand.u32 %s31, 1
          %s229 = scalar_lea.sflag [#allocation3], %s228
          %s230 = sand.u32 %s31, 1
          %s231 = smul.addr %s230, 8
          %s232 = scalar_lea.vmem [#allocation2], %s231
          %234 = vsyncadd %s229, 0
          %s235 = smul.addr %s21, 8
          %s236 = scalar_lea.hbm %s0, %s235
          %s238 = sshll.u32 %s236, 4
          %s239 = int_to_ptr.hbm [resolvable:$true] %s238
          %s240 = sshll.u32 %s232, 4
          %s241 = int_to_ptr.vmem [resolvable:$true] %s240
          %243 = dma.hbm_to_vmem [thread:$0]  %s239, 128, %s241, %s229
        $region36: #{tpu_custom_call.1} parent=31 // pred_fallthru
          _
        // Predicated region
        $region37: #{tpu_custom_call.1} parent=31 // pred_check
          %p244 = pneg %p67
        $region38: #{tpu_custom_call.1} parent=31 // pred_check_branch
          %246 = sbr.rel (%p244) target = $region40
        $region39: #{tpu_custom_call.1} parent=31 // pred_region
          %s247 = sand.u32 %s21, 1
          %s248 = scalar_lea.sflag [#allocation6], %s247
          %s249 = sand.u32 %s57, 1
          %s250 = smul.addr %s249, 8
          %s251 = scalar_lea.vmem [#allocation5], %s250
          %253 = vsyncadd %s248, 0
          %s254 = smul.addr %s21, 8
          %s255 = scalar_lea.hbm %s1, %s254
          %s257 = sshll.u32 %s255, 4
          %s258 = int_to_ptr.hbm [resolvable:$true] %s257
          %s259 = sshll.u32 %s251, 4
          %s260 = int_to_ptr.vmem [resolvable:$true] %s259
          %262 = dma.hbm_to_vmem [thread:$0]  %s258, 128, %s260, %s248
        $region40: #{tpu_custom_call.1} parent=31 // pred_fallthru
          _
      $region32: #{tpu_custom_call.1} parent=5 // pred_fallthru
        _
      %p263 = scmp.le.s32.totalorder 1, %s21
      %p264 = scmp.lt.s32.totalorder %s21, 3
      %p265 = pnand %p263, %p264
      %p266 = pneg %p265
      // Predicated region
      $region41: #{tpu_custom_call.1} parent=5 // pred_check
        _
      $region42: #{tpu_custom_call.1} parent=5 // pred_check_branch
        %268 = sbr.rel (%p265) target = $region44
      $region43: #{tpu_custom_call.1} parent=5 // pred_region
        %s269 = ssub.s32 %s21, 1
        %s270 = sand.u32 %s34, 1
        %s271 = scalar_lea.sflag [#allocation3], %s270
        %s272 = sand.u32 %s34, 1
        %s273 = smul.addr %s272, 8
        %s274 = scalar_lea.vmem [#allocation2], %s273
        // Predicated region
        $region45: #{tpu_custom_call.1} parent=43 // pred_check
          %p275 = pneg %p47
        $region46: #{tpu_custom_call.1} parent=43 // pred_check_branch
          %277 = sbr.rel (%p275) target = $region48
        $region47: #{tpu_custom_call.1} parent=43 // pred_region
          %279 = dma.done %s271, 128
        $region48: #{tpu_custom_call.1} parent=43 // pred_fallthru
          _
        %s280 = sand.u32 %s26, 1
        %s281 = scalar_lea.sflag [#allocation6], %s280
        %s282 = sand.u32 %s60, 1
        %s283 = smul.addr %s282, 8
        %s284 = scalar_lea.vmem [#allocation5], %s283
        // Predicated region
        $region49: #{tpu_custom_call.1} parent=43 // pred_check
          %p285 = pneg %p73
        $region50: #{tpu_custom_call.1} parent=43 // pred_check_branch
          %287 = sbr.rel (%p285) target = $region52
        $region51: #{tpu_custom_call.1} parent=43 // pred_region
          %289 = dma.done %s281, 128
        $region52: #{tpu_custom_call.1} parent=43 // pred_fallthru
          _
        // Predicated region
        $region53: #{tpu_custom_call.1} parent=43 // pred_check
          %p290 = pneg %p94
        $region54: #{tpu_custom_call.1} parent=43 // pred_check_branch
          %292 = sbr.rel (%p290) target = $region56
        $region55: #{tpu_custom_call.1} parent=43 // pred_region
          %294 = dma.done [#allocation6], 512
        $region56: #{tpu_custom_call.1} parent=43 // pred_fallthru
          _
        %s295 = sand.u32 %s34, 1
        %s296 = scalar_lea.sflag [#allocation3], %s295
        %s297 = sand.u32 %s34, 1
        %s298 = smul.addr %s297, 8
        %s299 = scalar_lea.vmem [#allocation2], %s298
        %p300 = pneg %p47
        %p301 = pneg %p44
        %s302 = sand.u32 %s26, 1
        %s303 = scalar_lea.sflag [#allocation6], %s302
        %s304 = sand.u32 %s60, 1
        %s305 = smul.addr %s304, 8
        %s306 = scalar_lea.vmem [#allocation5], %s305
        %p307 = pneg %p73
        %p308 = pneg %p70
        %p309 = pneg %p94
        %p310 = pneg %p91
        %p311 = pneg %p115
        %p312 = pneg %p112
        %p313 = pneg %p136
        %p314 = pneg %p133
        %p315 = pneg %p157
        %p316 = pneg %p154
        %p317 = pneg %p183
        %p318 = pneg %p180
        %s319 = sand.u32 %s170, 1
        %s320 = scalar_lea.sflag [#allocation4], %s319
        %s321 = sand.u32 %s170, 1
        %s322 = smul.addr %s321, 8
        %s323 = scalar_lea.vmem [#allocation8], %s322
        %v324 = vld [vmem:[%s274] sm:$0xff]
        %v325 = vld [vmem:[#allocation7] sm:$0xff]
        %v326 = vld [vmem:[#allocation7 + $0x8] sm:$0xff]
        %v327 = vld [vmem:[#allocation7 + $0x10] sm:$0xff]
        %v328 = vld [vmem:[#allocation7 + $0x18] sm:$0xff]
        %v329 = vld [vmem:[%s3] sm:$0x1]
        %v331 = vperm.slane %v329, 0
        %vm333 = vcmask 261120
        %v335 = vsel %vm333, %v324, 0
        %337 = vmatpush.msra.mxu0 0.0
        %338 = vmatpush.msra.mxu0 0.0
        %339 = vmatpush.msra.mxu0 0.0
        %340 = vmatpush.msra.mxu0 0.0
        %341 = vmatpush.msra.mxu0 0.0
        %342 = vmatpush.msra.mxu0 0.0
        %343 = vmatpush.msra.mxu0 0.0
        %344 = vmatpush.msra.mxu0 0.0
        %345 = vmatpush.msra.mxu0 0.0
        %346 = vmatpush.msra.mxu0 0.0
        %347 = vmatpush.msra.mxu0 0.0
        %348 = vmatpush.msra.mxu0 0.0
        %v349 = vand.u32 %v328, 4294901760
        %350 = vmatpush.msra.mxu0 %v349
        %v351 = vand.u32 %v327, 4294901760
        %352 = vmatpush.msra.mxu0 %v351
        %v353 = vand.u32 %v326, 4294901760
        %354 = vmatpush.msra.mxu0 %v353
        %v355 = vand.u32 %v325, 4294901760
        %356 = vmatpush.msra.mxu0 %v355
        %v357 = vand.u32 %v335, 4294901760
        %v358 = vsub.f32 %v335, %v357
        %v359 = vand.u32 %v358, 4294901760
        %v360 = vsub.f32 %v358, %v359
        %v361 = vand.u32 %v360, 4294901760
        %362 = vmatmul.f32.gmra.mxu0 %v361
        %v363 = vpop.f32.mrf.mxu0
        %v364 = vadd.f32 %v331, %v363
        %365 = vdwg.mxu0
        %366 = vmatpush.msra.mxu0 0.0
        %367 = vmatpush.msra.mxu0 0.0
        %368 = vmatpush.msra.mxu0 0.0
        %369 = vmatpush.msra.mxu0 0.0
        %370 = vmatpush.msra.mxu0 0.0
        %371 = vmatpush.msra.mxu0 0.0
        %372 = vmatpush.msra.mxu0 0.0
        %373 = vmatpush.msra.mxu0 0.0
        %374 = vmatpush.msra.mxu0 0.0
        %375 = vmatpush.msra.mxu0 0.0
        %376 = vmatpush.msra.mxu0 0.0
        %377 = vmatpush.msra.mxu0 0.0
        %v378 = vand.u32 %v328, 4294901760
        %v379 = vsub.f32 %v328, %v378
        %v380 = vand.u32 %v379, 4294901760
        %v381 = vsub.f32 %v379, %v380
        %v382 = vand.u32 %v381, 4294901760
        %383 = vmatpush.msra.mxu0 %v382
        %v384 = vand.u32 %v327, 4294901760
        %v385 = vsub.f32 %v327, %v384
        %v386 = vand.u32 %v385, 4294901760
        %v387 = vsub.f32 %v385, %v386
        %v388 = vand.u32 %v387, 4294901760
        %389 = vmatpush.msra.mxu0 %v388
        %v390 = vand.u32 %v326, 4294901760
        %v391 = vsub.f32 %v326, %v390
        %v392 = vand.u32 %v391, 4294901760
        %v393 = vsub.f32 %v391, %v392
        %v394 = vand.u32 %v393, 4294901760
        %395 = vmatpush.msra.mxu0 %v394
        %v396 = vand.u32 %v325, 4294901760
        %v397 = vsub.f32 %v325, %v396
        %v398 = vand.u32 %v397, 4294901760
        %v399 = vsub.f32 %v397, %v398
        %v400 = vand.u32 %v399, 4294901760
        %401 = vmatpush.msra.mxu0 %v400
        %v402 = vand.u32 %v335, 4294901760
        %403 = vmatmul.f32.gmra.mxu0 %v402
        %v404 = vpop.f32.mrf.mxu0
        %v405 = vadd.f32 %v364, %v404
        %406 = vdwg.mxu0
        %407 = vmatpush.msra.mxu0 0.0
        %408 = vmatpush.msra.mxu0 0.0
        %409 = vmatpush.msra.mxu0 0.0
        %410 = vmatpush.msra.mxu0 0.0
        %411 = vmatpush.msra.mxu0 0.0
        %412 = vmatpush.msra.mxu0 0.0
        %413 = vmatpush.msra.mxu0 0.0
        %414 = vmatpush.msra.mxu0 0.0
        %415 = vmatpush.msra.mxu0 0.0
        %416 = vmatpush.msra.mxu0 0.0
        %417 = vmatpush.msra.mxu0 0.0
        %418 = vmatpush.msra.mxu0 0.0
        %v419 = vand.u32 %v328, 4294901760
        %v420 = vsub.f32 %v328, %v419
        %421 = vmatpush.msra.mxu0 %v420
        %v422 = vand.u32 %v327, 4294901760
        %v423 = vsub.f32 %v327, %v422
        %424 = vmatpush.msra.mxu0 %v423
        %v425 = vand.u32 %v326, 4294901760
        %v426 = vsub.f32 %v326, %v425
        %427 = vmatpush.msra.mxu0 %v426
        %v428 = vand.u32 %v325, 4294901760
        %v429 = vsub.f32 %v325, %v428
        %430 = vmatpush.msra.mxu0 %v429
        %v431 = vand.u32 %v335, 4294901760
        %v432 = vsub.f32 %v335, %v431
        %433 = vmatmul.f32.gmra.mxu0 %v432
        %v434 = vpop.f32.mrf.mxu0
        %v435 = vadd.f32 %v405, %v434
        %436 = vdwg.mxu0
        %437 = vmatpush.msra.mxu0 0.0
        %438 = vmatpush.msra.mxu0 0.0
        %439 = vmatpush.msra.mxu0 0.0
        %440 = vmatpush.msra.mxu0 0.0
        %441 = vmatpush.msra.mxu0 0.0
        %442 = vmatpush.msra.mxu0 0.0
        %443 = vmatpush.msra.mxu0 0.0
        %444 = vmatpush.msra.mxu0 0.0
        %445 = vmatpush.msra.mxu0 0.0
        %446 = vmatpush.msra.mxu0 0.0
        %447 = vmatpush.msra.mxu0 0.0
        %448 = vmatpush.msra.mxu0 0.0
        %v449 = vand.u32 %v328, 4294901760
        %450 = vmatpush.msra.mxu0 %v449
        %v451 = vand.u32 %v327, 4294901760
        %452 = vmatpush.msra.mxu0 %v451
        %v453 = vand.u32 %v326, 4294901760
        %454 = vmatpush.msra.mxu0 %v453
        %v455 = vand.u32 %v325, 4294901760
        %456 = vmatpush.msra.mxu0 %v455
        %v457 = vand.u32 %v335, 4294901760
        %v458 = vsub.f32 %v335, %v457
        %v459 = vand.u32 %v458, 4294901760
        %460 = vmatmul.f32.gmra.mxu0 %v459
        %v461 = vpop.f32.mrf.mxu0
        %v462 = vadd.f32 %v435, %v461
        %463 = vdwg.mxu0
        %464 = vmatpush.msra.mxu0 0.0
        %465 = vmatpush.msra.mxu0 0.0
        %466 = vmatpush.msra.mxu0 0.0
        %467 = vmatpush.msra.mxu0 0.0
        %468 = vmatpush.msra.mxu0 0.0
        %469 = vmatpush.msra.mxu0 0.0
        %470 = vmatpush.msra.mxu0 0.0
        %471 = vmatpush.msra.mxu0 0.0
        %472 = vmatpush.msra.mxu0 0.0
        %473 = vmatpush.msra.mxu0 0.0
        %474 = vmatpush.msra.mxu0 0.0
        %475 = vmatpush.msra.mxu0 0.0
        %v476 = vand.u32 %v328, 4294901760
        %v477 = vsub.f32 %v328, %v476
        %v478 = vand.u32 %v477, 4294901760
        %479 = vmatpush.msra.mxu0 %v478
        %v480 = vand.u32 %v327, 4294901760
        %v481 = vsub.f32 %v327, %v480
        %v482 = vand.u32 %v481, 4294901760
        %483 = vmatpush.msra.mxu0 %v482
        %v484 = vand.u32 %v326, 4294901760
        %v485 = vsub.f32 %v326, %v484
        %v486 = vand.u32 %v485, 4294901760
        %487 = vmatpush.msra.mxu0 %v486
        %v488 = vand.u32 %v325, 4294901760
        %v489 = vsub.f32 %v325, %v488
        %v490 = vand.u32 %v489, 4294901760
        %491 = vmatpush.msra.mxu0 %v490
        %v492 = vand.u32 %v335, 4294901760
        %493 = vmatmul.f32.gmra.mxu0 %v492
        %v494 = vpop.f32.mrf.mxu0
        %v495 = vadd.f32 %v462, %v494
        %496 = vdwg.mxu0
        %497 = vmatpush.msra.mxu0 0.0
        %498 = vmatpush.msra.mxu0 0.0
        %499 = vmatpush.msra.mxu0 0.0
        %500 = vmatpush.msra.mxu0 0.0
        %501 = vmatpush.msra.mxu0 0.0
        %502 = vmatpush.msra.mxu0 0.0
        %503 = vmatpush.msra.mxu0 0.0
        %504 = vmatpush.msra.mxu0 0.0
        %505 = vmatpush.msra.mxu0 0.0
        %506 = vmatpush.msra.mxu0 0.0
        %507 = vmatpush.msra.mxu0 0.0
        %508 = vmatpush.msra.mxu0 0.0
        %v509 = vand.u32 %v328, 4294901760
        %510 = vmatpush.msra.mxu0 %v509
        %v511 = vand.u32 %v327, 4294901760
        %512 = vmatpush.msra.mxu0 %v511
        %v513 = vand.u32 %v326, 4294901760
        %514 = vmatpush.msra.mxu0 %v513
        %v515 = vand.u32 %v325, 4294901760
        %516 = vmatpush.msra.mxu0 %v515
        %v517 = vand.u32 %v335, 4294901760
        %518 = vmatmul.f32.gmra.mxu0 %v517
        %v519 = vpop.f32.mrf.mxu0
        %v520 = vadd.f32 %v495, %v519
        %521 = vdwg.mxu0
        %v522 = vld [vmem:[%s284] sm:$0xff]
        %v523 = vadd.f32 %v520, %v522
        %v524 = vsel %vm333, %v523, 0.0
        %525 = vadd.xlane.f32.xlu0 %v524
        %v526 = vpop.xlane.xlu0 %525
        %v527 = vrcp.pop 32.0
        %v528 = vmul.f32 32.0, %v527
        %v529 = vsub.f32 1.0, %v528
        %v530 = vmul.f32 %v527, %v529
        %v531 = vadd.f32 %v527, %v530
        %vm532 = vweird.f32 %v527
        %v533 = vsel %vm532, %v527, %v531
        %v534 = vmul.f32 %v526, %v533
        %v535 = vmul.f32 %v523, %v523
        %v536 = vsel %vm333, %v535, 0.0
        %537 = vadd.xlane.f32.xlu0 %v536
        %v538 = vpop.xlane.xlu0 %537
        %v539 = vmul.f32 %v538, %v533
        %v540 = vmul.f32 %v534, %v534
        %v541 = vsub.f32 %v539, %v540
        %v542 = vmax.f32 %v541, 0.0
        %v543 = vsub.f32 %v523, %v534
        %v544 = vadd.f32 %v542, 1e-12
        %v545 = vrsqrt.pop %v544
        %v546 = vmul.f32 %v545, %v544
        %v547 = vmul.f32 %v546, %v545
        %v548 = vmul.f32 0.5, %v547
        %v549 = vsub.f32 1.5, %v548
        %v550 = vmul.f32 %v545, %v549
        %vm551 = vweird.f32 %v544
        %vm552 = vweird.f32 %v545
        %vm553 = vmor %vm551, %vm552
        %v554 = vsel %vm553, %v545, %v550
        %v555 = vmul.f32 %v543, %v554
        %v556 = vld [vmem:[%s4] sm:$0x1]
        %v558 = vperm.slane %v556, 0
        %v560 = vmul.f32 %v555, %v558
        %v561 = vld [vmem:[%s5] sm:$0x1]
        %v563 = vperm.slane %v561, 0
        %v565 = vadd.f32 %v560, %v563
        %566 = vst.msk [vmem:[%s323] sm:$0xff] %vm333, %v565
        %s567 = sand.u32 %s170, 1
        %s568 = scalar_lea.sflag [#allocation4], %s567
        %s569 = sand.u32 %s170, 1
        %s570 = smul.addr %s569, 8
        %s571 = scalar_lea.vmem [#allocation8], %s570
        // Predicated region
        $region57: #{tpu_custom_call.1} parent=43 // pred_check
          %p572 = pneg %p180
        $region58: #{tpu_custom_call.1} parent=43 // pred_check_branch
          %574 = sbr.rel (%p572) target = $region60
        $region59: #{tpu_custom_call.1} parent=43 // pred_region
          %576 = vsyncadd %s568, 0
          %s577 = smul.addr %s26, 8
          %s578 = scalar_lea.hbm %s6, %s577
          %s580 = sshll.u32 %s571, 4
          %s581 = int_to_ptr.vmem [resolvable:$true] %s580
          %s582 = sshll.u32 %s578, 4
          %s583 = int_to_ptr.hbm [resolvable:$true] %s582
          %585 = dma.vmem_to_hbm [thread:$0]  %s581, 128, %s583, %s568
        $region60: #{tpu_custom_call.1} parent=43 // pred_fallthru
          _
      $region44: #{tpu_custom_call.1} parent=5 // pred_fallthru
        _
      %p586 = scmp.le.s32.totalorder 2, %s21
      // Predicated region
      $region61: #{tpu_custom_call.1} parent=5 // pred_check
        %p587 = pneg %p586
      $region62: #{tpu_custom_call.1} parent=5 // pred_check_branch
        %589 = sbr.rel (%p587) target = $region64
      $region63: #{tpu_custom_call.1} parent=5 // pred_region
        %s590 = ssub.s32 %s21, 2
        // Predicated region
        $region65: #{tpu_custom_call.1} parent=63 // pred_check
          %p591 = pneg %p186
        $region66: #{tpu_custom_call.1} parent=63 // pred_check_branch
          %593 = sbr.rel (%p591) target = $region68
        $region67: #{tpu_custom_call.1} parent=63 // pred_region
          %s594 = sand.u32 %s171, 1
          %s595 = scalar_lea.sflag [#allocation4], %s594
          %s596 = sand.u32 %s171, 1
          %s597 = smul.addr %s596, 8
          %s598 = scalar_lea.vmem [#allocation8], %s597
          %600 = dma.done %s595, 128
        $region68: #{tpu_custom_call.1} parent=63 // pred_fallthru
          _
      $region64: #{tpu_custom_call.1} parent=5 // pred_fallthru
        _
    $region6: #{tpu_custom_call.1} parent=1 // loop_footer
      %s25 = sadd.s32 1, %s21
    $region7: #{tpu_custom_call.1} parent=1 // loop_footer_branch
      %20 = sbr.rel target = $region3
    $region8: #{tpu_custom_call.1} parent=1 // loop_exit
      _
    %601 = vsyncpa [#allocation3], 1
    %s602 = scalar_lea.sflag [#allocation3], 1
    %603 = vsyncpa %s602, 1
    %604 = vsyncpa [#allocation6], 1
    %s605 = scalar_lea.sflag [#allocation6], 1
    %606 = vsyncpa %s605, 1
    %607 = vsyncpa [#allocation4], 1
    %s608 = scalar_lea.sflag [#allocation4], 1
    %609 = vsyncpa %s608, 1

// kernel: tpu_custom_call.1
$region0: #{tpu_custom_call.1}
  #allocation0 [shape = 'u32[]', space=smem, size = 0x4, offset = 0x4, fixed_abs, tag = 'smem constant byte address 0x4 - core index']
  #allocation1 [shape = 'u32[72,128]{1,0:T(1,128)}', space=vmem, size = 0x9000, scoped, tag = 'internal scratch']
  %s0 = inlined_call_operand.hbm [shape: f32[16,32], index: 0, kind: input, shape index: {}]
  %s1 = inlined_call_operand.hbm [shape: f32[16,32], index: 1, kind: input, shape index: {}]
  %s2 = inlined_call_operand.hbm [shape: f32[32,32], index: 2, kind: input, shape index: {}]
  %s3 = inlined_call_operand.vmem [shape: f32[1,32], index: 3, kind: input, shape index: {}]
  %s4 = inlined_call_operand.vmem [shape: f32[1,32], index: 4, kind: input, shape index: {}]
  %s5 = inlined_call_operand.vmem [shape: f32[1,32], index: 5, kind: input, shape index: {}]
  %s6 = inlined_call_operand.hbm [shape: f32[16,32], index: 6, kind: output, shape index: {}]
  %s7 = sld [smem:[#allocation0]]
  $region69: #{tpu_custom_call.1} parent=0
    _
  %s9 = ssub.s32 1, %s7
  %s10 = scalar_select 0, %s9, %s7
  $region1: #{tpu_custom_call.1} parent=0
    #allocation2 [shape = 'u8[8192]{0}', space=vmem, size = 0x2000, scoped, tag = 'input window, operand 0']
    #allocation3 [shape = 's32[2]{0}', space=sflag, size = 0x8, scoped, tag = 'scoped memory for tpu_custom_call.1']
    #allocation4 [shape = 's32[2]{0}', space=sflag, size = 0x8, scoped, tag = 'scoped memory for tpu_custom_call.1']
    #allocation5 [shape = 'u8[8192]{0}', space=vmem, size = 0x2000, scoped, tag = 'input window, operand 1']
    #allocation6 [shape = 's32[2]{0}', space=sflag, size = 0x8, scoped, tag = 'scoped memory for tpu_custom_call.1']
    #allocation7 [shape = 'u8[16384]{0}', space=vmem, size = 0x4000, scoped, tag = 'input window, operand 2, single buffered']
    #allocation8 [shape = 'u8[8192]{0}', space=vmem, size = 0x2000, scoped, tag = 'output window, operand 0']
    %11 = vsyncpa [#allocation3], 0
    %s12 = scalar_lea.sflag [#allocation3], 1
    %13 = vsyncpa %s12, 0
    %14 = vsyncpa [#allocation6], 0
    %s15 = scalar_lea.sflag [#allocation6], 1
    %16 = vsyncpa %s15, 0
    %17 = vsyncpa [#allocation4], 0
    %s18 = scalar_lea.sflag [#allocation4], 1
    %19 = vsyncpa %s18, 0
    loop: start=0, step=1, limit=4
    $region2: #{tpu_custom_call.1} parent=1 // loop_pre_header
      _
    $region3: #{tpu_custom_call.1} parent=1 // loop_header
      %s21 = sphi 0, %s25
      %p22 = scmp.ge.s32.totalorder %s21, 4
      %s31 = sphi 0, %s33
      %s34 = sphi 0, %s31
      %s35 = sphi 0, %s34
      %s51 = sphi 0, %s35
      %s57 = sphi 0, %s59
      %s60 = sphi 0, %s57
      %s61 = sphi 0, %s60
      %s77 = sphi 0, %s61
      %s81 = sphi 0, %s81
      %s83 = sphi 0, %s81
      %s84 = sphi 0, %s83
      %s98 = sphi 0, %s84
      %s102 = sphi 0, %s102
      %s104 = sphi 0, %s102
      %s105 = sphi 0, %s104
      %s119 = sphi 0, %s105
      %s123 = sphi 0, %s123
      %s125 = sphi 0, %s123
      %s126 = sphi 0, %s125
      %s140 = sphi 0, %s126
      %s144 = sphi 0, %s144
      %s146 = sphi 0, %s144
      %s147 = sphi 0, %s146
      %s161 = sphi 0, %s147
      %s167 = sphi 0, %s169
      %s170 = sphi 0, %s167
      %s171 = sphi 0, %s170
      %s187 = sphi 0, %s171
    $region4: #{tpu_custom_call.1} parent=1 // loop_header_branch
      %24 = sbr.rel (%p22) target = $region8
    $region5: #{tpu_custom_call.1} parent=1 // loop_body
      %s26 = ssub.s32 %s21, 1
      %s27 = ssub.s32 %s21, 2
      %s28 = sadd.s32 %s21, 1
      %s29 = ssub.s32 %s21, %s28
      %p30 = scmp.eq.s32.totalorder %s29, 0
      %s32 = sadd.s32 %s31, 1
      %s33 = scalar_select %p30, %s31, %s32
      %p36 = pneg %p30
      %p37 = scmp.eq.s32.totalorder %s21, 1
      %p38 = por %p36, %p37
      %p39 = scmp.ne.s32.totalorder %s31, %s34
      %p40 = scmp.eq.s32.totalorder %s21, 0
      %p41 = por %p39, %p40
      %p42 = scmp.ne.s32.totalorder %s31, %s34
      %p43 = scmp.eq.s32.totalorder %s26, 1
      %p44 = por %p42, %p43
      %p45 = scmp.ne.s32.totalorder %s34, %s35
      %p46 = scmp.eq.s32.totalorder %s26, 0
      %p47 = por %p45, %p46
      %p48 = scmp.ne.s32.totalorder %s34, %s35
      %p49 = scmp.eq.s32.totalorder %s27, 1
      %p50 = por %p48, %p49
      %p52 = scmp.ne.s32.totalorder %s35, %s51
      %p53 = scmp.eq.s32.totalorder %s27, 0
      %p54 = por %p52, %p53
      %s55 = ssub.s32 %s21, %s28
      %p56 = scmp.eq.s32.totalorder %s55, 0
      %s58 = sadd.s32 %s57, 1
      %s59 = scalar_select %p56, %s57, %s58
      %p62 = pneg %p56
      %p63 = scmp.eq.s32.totalorder %s21, 1
      %p64 = por %p62, %p63
      %p65 = scmp.ne.s32.totalorder %s57, %s60
      %p66 = scmp.eq.s32.totalorder %s21, 0
      %p67 = por %p65, %p66
      %p68 = scmp.ne.s32.totalorder %s57, %s60
      %p69 = scmp.eq.s32.totalorder %s26, 1
      %p70 = por %p68, %p69
      %p71 = scmp.ne.s32.totalorder %s60, %s61
      %p72 = scmp.eq.s32.totalorder %s26, 0
      %p73 = por %p71, %p72
      %p74 = scmp.ne.s32.totalorder %s60, %s61
      %p75 = scmp.eq.s32.totalorder %s27, 1
      %p76 = por %p74, %p75
      %p78 = scmp.ne.s32.totalorder %s61, %s77
      %p79 = scmp.eq.s32.totalorder %s27, 0
      %p80 = por %p78, %p79
      %s82 = sadd.s32 %s81, 1
      %p85 = scmp.eq.s32.totalorder %s21, 1
      %p86 = scmp.ne.s32.totalorder %s81, %s83
      %p87 = scmp.eq.s32.totalorder %s21, 0
      %p88 = por %p86, %p87
      %p89 = scmp.ne.s32.totalorder %s81, %s83
      %p90 = scmp.eq.s32.totalorder %s26, 1
      %p91 = por %p89, %p90
      %p92 = scmp.ne.s32.totalorder %s83, %s84
      %p93 = scmp.eq.s32.totalorder %s26, 0
      %p94 = por %p92, %p93
      %p95 = scmp.ne.s32.totalorder %s83, %s84
      %p96 = scmp.eq.s32.totalorder %s27, 1
      %p97 = por %p95, %p96
      %p99 = scmp.ne.s32.totalorder %s84, %s98
      %p100 = scmp.eq.s32.totalorder %s27, 0
      %p101 = por %p99, %p100
      %s103 = sadd.s32 %s102, 1
      %p106 = scmp.eq.s32.totalorder %s21, 1
      %p107 = scmp.ne.s32.totalorder %s102, %s104
      %p108 = scmp.eq.s32.totalorder %s21, 0
      %p109 = por %p107, %p108
      %p110 = scmp.ne.s32.totalorder %s102, %s104
      %p111 = scmp.eq.s32.totalorder %s26, 1
      %p112 = por %p110, %p111
      %p113 = scmp.ne.s32.totalorder %s104, %s105
      %p114 = scmp.eq.s32.totalorder %s26, 0
      %p115 = por %p113, %p114
      %p116 = scmp.ne.s32.totalorder %s104, %s105
      %p117 = scmp.eq.s32.totalorder %s27, 1
      %p118 = por %p116, %p117
      %p120 = scmp.ne.s32.totalorder %s105, %s119
      %p121 = scmp.eq.s32.totalorder %s27, 0
      %p122 = por %p120, %p121
      %s124 = sadd.s32 %s123, 1
      %p127 = scmp.eq.s32.totalorder %s21, 1
      %p128 = scmp.ne.s32.totalorder %s123, %s125
      %p129 = scmp.eq.s32.totalorder %s21, 0
      %p130 = por %p128, %p129
      %p131 = scmp.ne.s32.totalorder %s123, %s125
      %p132 = scmp.eq.s32.totalorder %s26, 1
      %p133 = por %p131, %p132
      %p134 = scmp.ne.s32.totalorder %s125, %s126
      %p135 = scmp.eq.s32.totalorder %s26, 0
      %p136 = por %p134, %p135
      %p137 = scmp.ne.s32.totalorder %s125, %s126
      %p138 = scmp.eq.s32.totalorder %s27, 1
      %p139 = por %p137, %p138
      %p141 = scmp.ne.s32.totalorder %s126, %s140
      %p142 = scmp.eq.s32.totalorder %s27, 0
      %p143 = por %p141, %p142
      %s145 = sadd.s32 %s144, 1
      %p148 = scmp.eq.s32.totalorder %s21, 1
      %p149 = scmp.ne.s32.totalorder %s144, %s146
      %p150 = scmp.eq.s32.totalorder %s21, 0
      %p151 = por %p149, %p150
      %p152 = scmp.ne.s32.totalorder %s144, %s146
      %p153 = scmp.eq.s32.totalorder %s26, 1
      %p154 = por %p152, %p153
      %p155 = scmp.ne.s32.totalorder %s146, %s147
      %p156 = scmp.eq.s32.totalorder %s26, 0
      %p157 = por %p155, %p156
      %p158 = scmp.ne.s32.totalorder %s146, %s147
      %p159 = scmp.eq.s32.totalorder %s27, 1
      %p160 = por %p158, %p159
      %p162 = scmp.ne.s32.totalorder %s147, %s161
      %p163 = scmp.eq.s32.totalorder %s27, 0
      %p164 = por %p162, %p163
      %s165 = ssub.s32 %s21, %s28
      %p166 = scmp.eq.s32.totalorder %s165, 0
      %s168 = sadd.s32 %s167, 1
      %s169 = scalar_select %p166, %s167, %s168
      %p172 = pneg %p166
      %p173 = scmp.eq.s32.totalorder %s21, 1
      %p174 = por %p172, %p173
      %p175 = scmp.ne.s32.totalorder %s167, %s170
      %p176 = scmp.eq.s32.totalorder %s21, 0
      %p177 = por %p175, %p176
      %p178 = scmp.ne.s32.totalorder %s167, %s170
      %p179 = scmp.eq.s32.totalorder %s26, 1
      %p180 = por %p178, %p179
      %p181 = scmp.ne.s32.totalorder %s170, %s171
      %p182 = scmp.eq.s32.totalorder %s26, 0
      %p183 = por %p181, %p182
      %p184 = scmp.ne.s32.totalorder %s170, %s171
      %p185 = scmp.eq.s32.totalorder %s27, 1
      %p186 = por %p184, %p185
      %p188 = scmp.ne.s32.totalorder %s171, %s187
      %p189 = scmp.eq.s32.totalorder %s27, 0
      %p190 = por %p188, %p189
      %p191 = scmp.le.s32.totalorder 1, %s21
      %p192 = scmp.lt.s32.totalorder %s21, 3
      %p193 = pnand %p191, %p192
      %p194 = pneg %p193
      // Predicated region
      $region9: #{tpu_custom_call.1} parent=5 // pred_check
        _
      $region10: #{tpu_custom_call.1} parent=5 // pred_check_branch
        %196 = sbr.rel (%p193) target = $region12
      $region11: #{tpu_custom_call.1} parent=5 // pred_region
        %s197 = ssub.s32 %s21, 1
        // Predicated region
        $region13: #{tpu_custom_call.1} parent=11 // pred_check
          %p198 = pneg %p94
        $region14: #{tpu_custom_call.1} parent=11 // pred_check_branch
          %200 = sbr.rel (%p198) target = $region16
        $region15: #{tpu_custom_call.1} parent=11 // pred_region
          %202 = vsyncadd [#allocation6], 0
          %s203 = sshll.u32 %s2, 4
          %s204 = int_to_ptr.hbm [resolvable:$true] %s203
          %s205 = sshll.u32 [#allocation7], 4
          %s206 = int_to_ptr.vmem [resolvable:$true] %s205
          %211 = dma.hbm_to_vmem [thread:$0]  %s204, 512, %s206, [#allocation6], 128, 128, 8
        $region16: #{tpu_custom_call.1} parent=11 // pred_fallthru
          _
        // Predicated region
        $region17: #{tpu_custom_call.1} parent=11 // pred_check
          %p212 = pneg %p115
        $region18: #{tpu_custom_call.1} parent=11 // pred_check_branch
          %214 = sbr.rel (%p212) target = $region20
        $region19: #{tpu_custom_call.1} parent=11 // pred_region
          _
        $region20: #{tpu_custom_call.1} parent=11 // pred_fallthru
          _
        // Predicated region
        $region21: #{tpu_custom_call.1} parent=11 // pred_check
          %p215 = pneg %p136
        $region22: #{tpu_custom_call.1} parent=11 // pred_check_branch
          %217 = sbr.rel (%p215) target = $region24
        $region23: #{tpu_custom_call.1} parent=11 // pred_region
          _
        $region24: #{tpu_custom_call.1} parent=11 // pred_fallthru
          _
        // Predicated region
        $region25: #{tpu_custom_call.1} parent=11 // pred_check
          %p218 = pneg %p157
        $region26: #{tpu_custom_call.1} parent=11 // pred_check_branch
          %220 = sbr.rel (%p218) target = $region28
        $region27: #{tpu_custom_call.1} parent=11 // pred_region
          _
        $region28: #{tpu_custom_call.1} parent=11 // pred_fallthru
          _
      $region12: #{tpu_custom_call.1} parent=5 // pred_fallthru
        _
      %p221 = scmp.lt.s32.totalorder %s21, 2
      // Predicated region
      $region29: #{tpu_custom_call.1} parent=5 // pred_check
        %p222 = pneg %p221
      $region30: #{tpu_custom_call.1} parent=5 // pred_check_branch
        %224 = sbr.rel (%p222) target = $region32
      $region31: #{tpu_custom_call.1} parent=5 // pred_region
        // Predicated region
        $region33: #{tpu_custom_call.1} parent=31 // pred_check
          %p225 = pneg %p41
        $region34: #{tpu_custom_call.1} parent=31 // pred_check_branch
          %227 = sbr.rel (%p225) target = $region36
        $region35: #{tpu_custom_call.1} parent=31 // pred_region
          %s228 = sand.u32 %s31, 1
          %s229 = scalar_lea.sflag [#allocation3], %s228
          %s230 = sand.u32 %s31, 1
          %s231 = smul.addr %s230, 8
          %s232 = scalar_lea.vmem [#allocation2], %s231
          %234 = vsyncadd %s229, 0
          %s235 = smul.addr %s21, 8
          %s236 = scalar_lea.hbm %s0, %s235
          %s238 = sshll.u32 %s236, 4
          %s239 = int_to_ptr.hbm [resolvable:$true] %s238
          %s240 = sshll.u32 %s232, 4
          %s241 = int_to_ptr.vmem [resolvable:$true] %s240
          %243 = dma.hbm_to_vmem [thread:$0]  %s239, 128, %s241, %s229
        $region36: #{tpu_custom_call.1} parent=31 // pred_fallthru
          _
        // Predicated region
        $region37: #{tpu_custom_call.1} parent=31 // pred_check
          %p244 = pneg %p67
        $region38: #{tpu_custom_call.1} parent=31 // pred_check_branch
          %246 = sbr.rel (%p244) target = $region40
        $region39: #{tpu_custom_call.1} parent=31 // pred_region
          %s247 = sand.u32 %s21, 1
          %s248 = scalar_lea.sflag [#allocation6], %s247
          %s249 = sand.u32 %s57, 1
          %s250 = smul.addr %s249, 8
          %s251 = scalar_lea.vmem [#allocation5], %s250
          %253 = vsyncadd %s248, 0
          %s254 = smul.addr %s21, 8
          %s255 = scalar_lea.hbm %s1, %s254
          %s257 = sshll.u32 %s255, 4
          %s258 = int_to_ptr.hbm [resolvable:$true] %s257
          %s259 = sshll.u32 %s251, 4
          %s260 = int_to_ptr.vmem [resolvable:$true] %s259
          %262 = dma.hbm_to_vmem [thread:$0]  %s258, 128, %s260, %s248
        $region40: #{tpu_custom_call.1} parent=31 // pred_fallthru
          _
      $region32: #{tpu_custom_call.1} parent=5 // pred_fallthru
        _
      %p263 = scmp.le.s32.totalorder 1, %s21
      %p264 = scmp.lt.s32.totalorder %s21, 3
      %p265 = pnand %p263, %p264
      %p266 = pneg %p265
      // Predicated region
      $region41: #{tpu_custom_call.1} parent=5 // pred_check
        _
      $region42: #{tpu_custom_call.1} parent=5 // pred_check_branch
        %268 = sbr.rel (%p265) target = $region44
      $region43: #{tpu_custom_call.1} parent=5 // pred_region
        %s269 = ssub.s32 %s21, 1
        %s270 = sand.u32 %s34, 1
        %s271 = scalar_lea.sflag [#allocation3], %s270
        %s272 = sand.u32 %s34, 1
        %s273 = smul.addr %s272, 8
        %s274 = scalar_lea.vmem [#allocation2], %s273
        // Predicated region
        $region45: #{tpu_custom_call.1} parent=43 // pred_check
          %p275 = pneg %p47
        $region46: #{tpu_custom_call.1} parent=43 // pred_check_branch
          %277 = sbr.rel (%p275) target = $region48
        $region47: #{tpu_custom_call.1} parent=43 // pred_region
          %279 = dma.done %s271, 128
        $region48: #{tpu_custom_call.1} parent=43 // pred_fallthru
          _
        %s280 = sand.u32 %s26, 1
        %s281 = scalar_lea.sflag [#allocation6], %s280
        %s282 = sand.u32 %s60, 1
        %s283 = smul.addr %s282, 8
        %s284 = scalar_lea.vmem [#allocation5], %s283
        // Predicated region
        $region49: #{tpu_custom_call.1} parent=43 // pred_check
          %p285 = pneg %p73
        $region50: #{tpu_custom_call.1} parent=43 // pred_check_branch
          %287 = sbr.rel (%p285) target = $region52
        $region51: #{tpu_custom_call.1} parent=43 // pred_region
          %289 = dma.done %s281, 128
        $region52: #{tpu_custom_call.1} parent=43 // pred_fallthru
          _
        // Predicated region
        $region53: #{tpu_custom_call.1} parent=43 // pred_check
          %p290 = pneg %p94
        $region54: #{tpu_custom_call.1} parent=43 // pred_check_branch
          %292 = sbr.rel (%p290) target = $region56
        $region55: #{tpu_custom_call.1} parent=43 // pred_region
          %294 = dma.done [#allocation6], 512
        $region56: #{tpu_custom_call.1} parent=43 // pred_fallthru
          _
        %s295 = sand.u32 %s34, 1
        %s296 = scalar_lea.sflag [#allocation3], %s295
        %s297 = sand.u32 %s34, 1
        %s298 = smul.addr %s297, 8
        %s299 = scalar_lea.vmem [#allocation2], %s298
        %p300 = pneg %p47
        %p301 = pneg %p44
        %s302 = sand.u32 %s26, 1
        %s303 = scalar_lea.sflag [#allocation6], %s302
        %s304 = sand.u32 %s60, 1
        %s305 = smul.addr %s304, 8
        %s306 = scalar_lea.vmem [#allocation5], %s305
        %p307 = pneg %p73
        %p308 = pneg %p70
        %p309 = pneg %p94
        %p310 = pneg %p91
        %p311 = pneg %p115
        %p312 = pneg %p112
        %p313 = pneg %p136
        %p314 = pneg %p133
        %p315 = pneg %p157
        %p316 = pneg %p154
        %p317 = pneg %p183
        %p318 = pneg %p180
        %s319 = sand.u32 %s170, 1
        %s320 = scalar_lea.sflag [#allocation4], %s319
        %s321 = sand.u32 %s170, 1
        %s322 = smul.addr %s321, 8
        %s323 = scalar_lea.vmem [#allocation8], %s322
        %v324 = vld [vmem:[%s274] sm:$0xff]
        %v325 = vld [vmem:[#allocation7] sm:$0xff]
        %v326 = vld [vmem:[#allocation7 + $0x8] sm:$0xff]
        %v327 = vld [vmem:[#allocation7 + $0x10] sm:$0xff]
        %v328 = vld [vmem:[#allocation7 + $0x18] sm:$0xff]
        %v329 = vld [vmem:[%s3] sm:$0x1]
        %v331 = vperm.slane %v329, 0
        %vm333 = vcmask 261120
        %v335 = vsel %vm333, %v324, 0
        %337 = vmatpush.msra.mxu0 0.0
        %338 = vmatpush.msra.mxu0 0.0
        %339 = vmatpush.msra.mxu0 0.0
        %340 = vmatpush.msra.mxu0 0.0
        %341 = vmatpush.msra.mxu0 0.0
        %342 = vmatpush.msra.mxu0 0.0
        %343 = vmatpush.msra.mxu0 0.0
        %344 = vmatpush.msra.mxu0 0.0
        %345 = vmatpush.msra.mxu0 0.0
        %346 = vmatpush.msra.mxu0 0.0
        %347 = vmatpush.msra.mxu0 0.0
        %348 = vmatpush.msra.mxu0 0.0
        %v349 = vand.u32 %v328, 4294901760
        %350 = vmatpush.msra.mxu0 %v349
        %v351 = vand.u32 %v327, 4294901760
        %352 = vmatpush.msra.mxu0 %v351
        %v353 = vand.u32 %v326, 4294901760
        %354 = vmatpush.msra.mxu0 %v353
        %v355 = vand.u32 %v325, 4294901760
        %356 = vmatpush.msra.mxu0 %v355
        %v357 = vand.u32 %v335, 4294901760
        %v358 = vsub.f32 %v335, %v357
        %v359 = vand.u32 %v358, 4294901760
        %v360 = vsub.f32 %v358, %v359
        %v361 = vand.u32 %v360, 4294901760
        %362 = vmatmul.f32.gmra.mxu0 %v361
        %v363 = vpop.f32.mrf.mxu0
        %v364 = vadd.f32 %v331, %v363
        %365 = vdwg.mxu0
        %366 = vmatpush.msra.mxu0 0.0
        %367 = vmatpush.msra.mxu0 0.0
        %368 = vmatpush.msra.mxu0 0.0
        %369 = vmatpush.msra.mxu0 0.0
        %370 = vmatpush.msra.mxu0 0.0
        %371 = vmatpush.msra.mxu0 0.0
        %372 = vmatpush.msra.mxu0 0.0
        %373 = vmatpush.msra.mxu0 0.0
        %374 = vmatpush.msra.mxu0 0.0
        %375 = vmatpush.msra.mxu0 0.0
        %376 = vmatpush.msra.mxu0 0.0
        %377 = vmatpush.msra.mxu0 0.0
        %v378 = vand.u32 %v328, 4294901760
        %v379 = vsub.f32 %v328, %v378
        %v380 = vand.u32 %v379, 4294901760
        %v381 = vsub.f32 %v379, %v380
        %v382 = vand.u32 %v381, 4294901760
        %383 = vmatpush.msra.mxu0 %v382
        %v384 = vand.u32 %v327, 4294901760
        %v385 = vsub.f32 %v327, %v384
        %v386 = vand.u32 %v385, 4294901760
        %v387 = vsub.f32 %v385, %v386
        %v388 = vand.u32 %v387, 4294901760
        %389 = vmatpush.msra.mxu0 %v388
        %v390 = vand.u32 %v326, 4294901760
        %v391 = vsub.f32 %v326, %v390
        %v392 = vand.u32 %v391, 4294901760
        %v393 = vsub.f32 %v391, %v392
        %v394 = vand.u32 %v393, 4294901760
        %395 = vmatpush.msra.mxu0 %v394
        %v396 = vand.u32 %v325, 4294901760
        %v397 = vsub.f32 %v325, %v396
        %v398 = vand.u32 %v397, 4294901760
        %v399 = vsub.f32 %v397, %v398
        %v400 = vand.u32 %v399, 4294901760
        %401 = vmatpush.msra.mxu0 %v400
        %v402 = vand.u32 %v335, 4294901760
        %403 = vmatmul.f32.gmra.mxu0 %v402
        %v404 = vpop.f32.mrf.mxu0
        %v405 = vadd.f32 %v364, %v404
        %406 = vdwg.mxu0
        %407 = vmatpush.msra.mxu0 0.0
        %408 = vmatpush.msra.mxu0 0.0
        %409 = vmatpush.msra.mxu0 0.0
        %410 = vmatpush.msra.mxu0 0.0
        %411 = vmatpush.msra.mxu0 0.0
        %412 = vmatpush.msra.mxu0 0.0
        %413 = vmatpush.msra.mxu0 0.0
        %414 = vmatpush.msra.mxu0 0.0
        %415 = vmatpush.msra.mxu0 0.0
        %416 = vmatpush.msra.mxu0 0.0
        %417 = vmatpush.msra.mxu0 0.0
        %418 = vmatpush.msra.mxu0 0.0
        %v419 = vand.u32 %v328, 4294901760
        %v420 = vsub.f32 %v328, %v419
        %421 = vmatpush.msra.mxu0 %v420
        %v422 = vand.u32 %v327, 4294901760
        %v423 = vsub.f32 %v327, %v422
        %424 = vmatpush.msra.mxu0 %v423
        %v425 = vand.u32 %v326, 4294901760
        %v426 = vsub.f32 %v326, %v425
        %427 = vmatpush.msra.mxu0 %v426
        %v428 = vand.u32 %v325, 4294901760
        %v429 = vsub.f32 %v325, %v428
        %430 = vmatpush.msra.mxu0 %v429
        %v431 = vand.u32 %v335, 4294901760
        %v432 = vsub.f32 %v335, %v431
        %433 = vmatmul.f32.gmra.mxu0 %v432
        %v434 = vpop.f32.mrf.mxu0
        %v435 = vadd.f32 %v405, %v434
        %436 = vdwg.mxu0
        %437 = vmatpush.msra.mxu0 0.0
        %438 = vmatpush.msra.mxu0 0.0
        %439 = vmatpush.msra.mxu0 0.0
        %440 = vmatpush.msra.mxu0 0.0
        %441 = vmatpush.msra.mxu0 0.0
        %442 = vmatpush.msra.mxu0 0.0
        %443 = vmatpush.msra.mxu0 0.0
        %444 = vmatpush.msra.mxu0 0.0
        %445 = vmatpush.msra.mxu0 0.0
        %446 = vmatpush.msra.mxu0 0.0
        %447 = vmatpush.msra.mxu0 0.0
        %448 = vmatpush.msra.mxu0 0.0
        %v449 = vand.u32 %v328, 4294901760
        %450 = vmatpush.msra.mxu0 %v449
        %v451 = vand.u32 %v327, 4294901760
        %452 = vmatpush.msra.mxu0 %v451
        %v453 = vand.u32 %v326, 4294901760
        %454 = vmatpush.msra.mxu0 %v453
        %v455 = vand.u32 %v325, 4294901760
        %456 = vmatpush.msra.mxu0 %v455
        %v457 = vand.u32 %v335, 4294901760
        %v458 = vsub.f32 %v335, %v457
        %v459 = vand.u32 %v458, 4294901760
        %460 = vmatmul.f32.gmra.mxu0 %v459
        %v461 = vpop.f32.mrf.mxu0
        %v462 = vadd.f32 %v435, %v461
        %463 = vdwg.mxu0
        %464 = vmatpush.msra.mxu0 0.0
        %465 = vmatpush.msra.mxu0 0.0
        %466 = vmatpush.msra.mxu0 0.0
        %467 = vmatpush.msra.mxu0 0.0
        %468 = vmatpush.msra.mxu0 0.0
        %469 = vmatpush.msra.mxu0 0.0
        %470 = vmatpush.msra.mxu0 0.0
        %471 = vmatpush.msra.mxu0 0.0
        %472 = vmatpush.msra.mxu0 0.0
        %473 = vmatpush.msra.mxu0 0.0
        %474 = vmatpush.msra.mxu0 0.0
        %475 = vmatpush.msra.mxu0 0.0
        %v476 = vand.u32 %v328, 4294901760
        %v477 = vsub.f32 %v328, %v476
        %v478 = vand.u32 %v477, 4294901760
        %479 = vmatpush.msra.mxu0 %v478
        %v480 = vand.u32 %v327, 4294901760
        %v481 = vsub.f32 %v327, %v480
        %v482 = vand.u32 %v481, 4294901760
        %483 = vmatpush.msra.mxu0 %v482
        %v484 = vand.u32 %v326, 4294901760
        %v485 = vsub.f32 %v326, %v484
        %v486 = vand.u32 %v485, 4294901760
        %487 = vmatpush.msra.mxu0 %v486
        %v488 = vand.u32 %v325, 4294901760
        %v489 = vsub.f32 %v325, %v488
        %v490 = vand.u32 %v489, 4294901760
        %491 = vmatpush.msra.mxu0 %v490
        %v492 = vand.u32 %v335, 4294901760
        %493 = vmatmul.f32.gmra.mxu0 %v492
        %v494 = vpop.f32.mrf.mxu0
        %v495 = vadd.f32 %v462, %v494
        %496 = vdwg.mxu0
        %497 = vmatpush.msra.mxu0 0.0
        %498 = vmatpush.msra.mxu0 0.0
        %499 = vmatpush.msra.mxu0 0.0
        %500 = vmatpush.msra.mxu0 0.0
        %501 = vmatpush.msra.mxu0 0.0
        %502 = vmatpush.msra.mxu0 0.0
        %503 = vmatpush.msra.mxu0 0.0
        %504 = vmatpush.msra.mxu0 0.0
        %505 = vmatpush.msra.mxu0 0.0
        %506 = vmatpush.msra.mxu0 0.0
        %507 = vmatpush.msra.mxu0 0.0
        %508 = vmatpush.msra.mxu0 0.0
        %v509 = vand.u32 %v328, 4294901760
        %510 = vmatpush.msra.mxu0 %v509
        %v511 = vand.u32 %v327, 4294901760
        %512 = vmatpush.msra.mxu0 %v511
        %v513 = vand.u32 %v326, 4294901760
        %514 = vmatpush.msra.mxu0 %v513
        %v515 = vand.u32 %v325, 4294901760
        %516 = vmatpush.msra.mxu0 %v515
        %v517 = vand.u32 %v335, 4294901760
        %518 = vmatmul.f32.gmra.mxu0 %v517
        %v519 = vpop.f32.mrf.mxu0
        %v520 = vadd.f32 %v495, %v519
        %521 = vdwg.mxu0
        %v522 = vld [vmem:[%s284] sm:$0xff]
        %v523 = vadd.f32 %v520, %v522
        %v524 = vsel %vm333, %v523, 0.0
        %525 = vadd.xlane.f32.xlu0 %v524
        %v526 = vpop.xlane.xlu0 %525
        %v527 = vrcp.pop 32.0
        %v528 = vmul.f32 32.0, %v527
        %v529 = vsub.f32 1.0, %v528
        %v530 = vmul.f32 %v527, %v529
        %v531 = vadd.f32 %v527, %v530
        %vm532 = vweird.f32 %v527
        %v533 = vsel %vm532, %v527, %v531
        %v534 = vmul.f32 %v526, %v533
        %v535 = vmul.f32 %v523, %v523
        %v536 = vsel %vm333, %v535, 0.0
        %537 = vadd.xlane.f32.xlu0 %v536
        %v538 = vpop.xlane.xlu0 %537
        %v539 = vmul.f32 %v538, %v533
        %v540 = vmul.f32 %v534, %v534
        %v541 = vsub.f32 %v539, %v540
        %v542 = vmax.f32 %v541, 0.0
        %v543 = vsub.f32 %v523, %v534
        %v544 = vadd.f32 %v542, 1e-12
        %v545 = vrsqrt.pop %v544
        %v546 = vmul.f32 %v545, %v544
        %v547 = vmul.f32 %v546, %v545
        %v548 = vmul.f32 0.5, %v547
        %v549 = vsub.f32 1.5, %v548
        %v550 = vmul.f32 %v545, %v549
        %vm551 = vweird.f32 %v544
        %vm552 = vweird.f32 %v545
        %vm553 = vmor %vm551, %vm552
        %v554 = vsel %vm553, %v545, %v550
        %v555 = vmul.f32 %v543, %v554
        %v556 = vld [vmem:[%s4] sm:$0x1]
        %v558 = vperm.slane %v556, 0
        %v560 = vmul.f32 %v555, %v558
        %v561 = vld [vmem:[%s5] sm:$0x1]
        %v563 = vperm.slane %v561, 0
        %v565 = vadd.f32 %v560, %v563
        %566 = vst.msk [vmem:[%s323] sm:$0xff] %vm333, %v565
        %s567 = sand.u32 %s170, 1
        %s568 = scalar_lea.sflag [#allocation4], %s567
        %s569 = sand.u32 %s170, 1
        %s570 = smul.addr %s569, 8
        %s571 = scalar_lea.vmem [#allocation8], %s570
        // Predicated region
        $region57: #{tpu_custom_call.1} parent=43 // pred_check
          %p572 = pneg %p180
        $region58: #{tpu_custom_call.1} parent=43 // pred_check_branch
          %574 = sbr.rel (%p572) target = $region60
        $region59: #{tpu_custom_call.1} parent=43 // pred_region
          %576 = vsyncadd %s568, 0
          %s577 = smul.addr %s26, 8
          %s578 = scalar_lea.hbm %s6, %s577
          %s580 = sshll.u32 %s571, 4
          %s581 = int_to_ptr.vmem [resolvable:$true] %s580
          %s582 = sshll.u32 %s578, 4
          %s583 = int_to_ptr.hbm [resolvable:$true] %s582
          %585 = dma.vmem_to_hbm [thread:$0]  %s581, 128, %s583, %s568
        $region60: #{tpu_custom_call.1} parent=43 // pred_fallthru
          _
      $region44: #{tpu_custom_call.1} parent=5 // pred_fallthru
        _
      %p586 = scmp.le.s32.totalorder 2, %s21
      // Predicated region
      $region61: #{tpu_custom_call.1} parent=5 // pred_check
        %p587 = pneg %p586
      $region62: #{tpu_custom_call.1} parent=5 // pred_check_branch
        %589 = sbr.rel (%p587) target = $region64
      $region63: #{tpu_custom_call.1} parent=5 // pred_region
        %s590 = ssub.s32 %s21, 2
        // Predicated region
        $region65: #{tpu_custom_call.1} parent=63 // pred_check
          %p591 = pneg %p186
        $region66: #{tpu_custom_call.1} parent=63 // pred_check_branch
          %593 = sbr.rel (%p591) target = $region68
        $region67: #{tpu_custom_call.1} parent=63 // pred_region
          %s594 = sand.u32 %s171, 1
          %s595 = scalar_lea.sflag [#allocation4], %s594
          %s596 = sand.u32 %s171, 1
          %s597 = smul.addr %s596, 8
          %s598 = scalar_lea.vmem [#allocation8], %s597
          %600 = dma.done %s595, 128
        $region68: #{tpu_custom_call.1} parent=63 // pred_fallthru
          _
      $region64: #{tpu_custom_call.1} parent=5 // pred_fallthru
        _
    $region6: #{tpu_custom_call.1} parent=1 // loop_footer
      %s25 = sadd.s32 1, %s21
    $region7: #{tpu_custom_call.1} parent=1 // loop_footer_branch
      %20 = sbr.rel target = $region3
    $region8: #{tpu_custom_call.1} parent=1 // loop_exit
      _
    %601 = vsyncpa [#allocation3], 1
    %s602 = scalar_lea.sflag [#allocation3], 1
    %603 = vsyncpa %s602, 1
    %604 = vsyncpa [#allocation6], 1
    %s605 = scalar_lea.sflag [#allocation6], 1
    %606 = vsyncpa %s605, 1
    %607 = vsyncpa [#allocation4], 1
    %s608 = scalar_lea.sflag [#allocation4], 1
    %609 = vsyncpa %s608, 1

</llo_original>
